<compile_context>
chip_gen: v5e
topology: v5e:2x2
jax: 0.10.0
libtpu: 0.0.40
codegen_flags: <defaults>
</compile_context>

<pallas_src>
import jax
import jax.numpy as jnp
from jax import lax
from jax.experimental import pallas as pl
from jax.experimental.pallas import tpu as pltpu

_PAD = 4   # max dilation used by conv_1..conv_3


def _group_norm(y, gamma, beta, oh, ohT, eps=1e-5):
    """GroupNorm over a (T, C) f32 slab.

    oh: (C, G) one-hot group membership, ohT: (G, C).  Per-group sums of y and
    y*y are batched into a single (2, C) x (C, G) matmul and broadcast back to
    channels with one (2, G) x (G, C) matmul.
    """
    Tn, C = y.shape
    G = oh.shape[1]
    n = float(Tn * (C // G))
    stats = jnp.concatenate(
        [jnp.sum(y, axis=0, keepdims=True),
         jnp.sum(y * y, axis=0, keepdims=True)], axis=0)               # (2, C)
    g = jnp.dot(stats, oh, preferred_element_type=jnp.float32) / n     # (2, G)
    mean_g = g[0:1, :]
    var_g = jnp.maximum(g[1:2, :] - mean_g * mean_g, 0.0)              # clamp E[x^2]-E[x]^2
    gc = jnp.dot(jnp.concatenate([mean_g, var_g], axis=0), ohT,
                 preferred_element_type=jnp.float32)                   # (2, C)
    yn = (y - gc[0:1, :]) * lax.rsqrt(gc[1:2, :] + eps)
    return yn * gamma + beta


def aggregate_kernel(x_ref, w123_ref, b123_ref, g123_ref, ohdi_ref, ohdiT_ref,
                     w4_ref, wqkv_ref, bqkv_ref, walt_ref, misc_ref,
                     w5_ref, g5_ref, ohdim_ref, ohdimT_ref,
                     o_ref, xpad_ref, catpad_ref):
    x = x_ref[0].astype(jnp.float32)              # (T, dim) -- also the residual
    Tn, dim = x.shape
    x_bf = x.astype(jnp.bfloat16)

    # Zero-padded copy of x in VMEM scratch: every dilated tap is a static slice.
    xpad_ref[0:_PAD, :] = jnp.zeros((_PAD, dim), jnp.float32)
    xpad_ref[_PAD:_PAD + Tn, :] = x
    xpad_ref[_PAD + Tn:2 * _PAD + Tn, :] = jnp.zeros((_PAD, dim), jnp.float32)

    oh_di, ohT_di = ohdi_ref[...], ohdiT_ref[...]
    oh_dim, ohT_dim = ohdim_ref[...], ohdimT_ref[...]

    # ---- conv_1/2/3 : dilated k=3 Conv1d + GroupNorm(8) + ReLU.
    # The 3 taps are fused into one (T, 3*dim) x (3*dim, di) bf16 matmul each.
    parts = []
    for i, d in enumerate((1, 2, 4)):
        xs = jnp.concatenate(
            [xpad_ref[_PAD - d:_PAD - d + Tn, :],      # x[t-d]
             x,                                        # x[t]
             xpad_ref[_PAD + d:_PAD + d + Tn, :]],     # x[t+d]
            axis=-1).astype(jnp.bfloat16)              # (T, 3*dim)
        y = jnp.dot(xs, w123_ref[i], preferred_element_type=jnp.float32)
        y = y + b123_ref[i:i + 1, :]
        y = _group_norm(y, g123_ref[i, 0:1, :], g123_ref[i, 1:2, :], oh_di, ohT_di)
        parts.append(jnp.maximum(y, 0.0))              # (T, di)

    # ---- conv_4 : pointwise Conv1d (no bias) + ReLU
    x4 = jnp.maximum(
        jnp.dot(x_bf, w4_ref[...], preferred_element_type=jnp.float32), 0.0)

    # ---- NonLocalBlock1D(di, sub_sample=False, bn_layer=True)
    x4_bf = x4.astype(jnp.bfloat16)
    q = jnp.dot(x4_bf, wqkv_ref[0], preferred_element_type=jnp.float32) + bqkv_ref[0:1, :]
    k = jnp.dot(x4_bf, wqkv_ref[1], preferred_element_type=jnp.float32) + bqkv_ref[1:2, :]
    v = jnp.dot(x4_bf, wqkv_ref[2], preferred_element_type=jnp.float32) + bqkv_ref[2:3, :]
    # NOTE: for very long T (v7x, 64 MiB VMEM) tile this over query-row chunks
    # to cap the (T, T) score buffer; no softmax is involved, only a /T scale.
    attn = lax.dot_general(q.astype(jnp.bfloat16), k.astype(jnp.bfloat16),
                           (((1,), (1,)), ((), ())),
                           preferred_element_type=jnp.float32) * (1.0 / float(Tn))
    nl = jnp.dot(attn.astype(jnp.bfloat16), v.astype(jnp.bfloat16),
                 preferred_element_type=jnp.float32)
    alt = jnp.dot(nl.astype(jnp.bfloat16), walt_ref[...],
                  preferred_element_type=jnp.float32) + misc_ref[0:1, :]
    # BatchNorm1d of the `alter` branch (inference form, running stats).  The
    # PyTorch __init__ zeroes its weight & bias, so this branch contributes 0.
    bn_g, bn_b = misc_ref[1:2, :], misc_ref[2:3, :]
    bn_m, bn_v = misc_ref[3:4, :], misc_ref[4:5, :]
    alt = (alt - bn_m) * lax.rsqrt(bn_v + 1e-5) * bn_g + bn_b
    parts.append(alt + x4)                             # non-local output (T, di)

    # ---- conv_5 on cat([out1, out2, out3, out_nl], channel) : k=3 + GN(8) + ReLU.
    # The channel-concat is folded into the weight layout and the 3 taps are
    # fused into a single (T, 3*dim) x (3*dim, dim) bf16 matmul.
    cat = jnp.concatenate(parts, axis=-1)              # (T, 4*di) == (T, dim), f32
    catpad_ref[0:1, :] = jnp.zeros((1, dim), jnp.float32)
    catpad_ref[1:1 + Tn, :] = cat
    catpad_ref[1 + Tn:2 + Tn, :] = jnp.zeros((1, dim), jnp.float32)
    xs5 = jnp.concatenate(
        [catpad_ref[0:Tn, :], cat, catpad_ref[2:2 + Tn, :]],
        axis=-1).astype(jnp.bfloat16)                  # (T, 3*dim)
    y5 = jnp.dot(xs5, w5_ref[...], preferred_element_type=jnp.float32)
    y5 = _group_norm(y5, g5_ref[0:1, :], g5_ref[1:2, :], oh_dim, ohT_dim)
    y5 = jnp.maximum(y5, 0.0)

    o_ref[0] = (y5 + x).astype(o_ref.dtype)


# ---------------------------------------------------------------------------
# host-side glue
# ---------------------------------------------------------------------------
def init_params(key, dim=32, reduction=4):
    """Deterministic synthetic parameters matching the PyTorch module shapes."""
    di = dim // reduction
    D = max(di // 2, 1)                      # non_local inter_channels
    ks = jax.random.split(key, 8)
    s = 0.05
    w123 = jax.random.normal(ks[0], (3, 3, dim, di), jnp.float32) * s   # [conv, tap, Cin, Cout]
    b123 = jax.random.normal(ks[1], (3, di), jnp.float32) * s
    g123 = jnp.stack([jnp.ones((3, di)), jnp.zeros((3, di))], axis=1).astype(jnp.float32)
    w4 = jax.random.normal(ks[2], (dim, di), jnp.float32) * s
    wqkv = jax.random.normal(ks[3], (3, di, D), jnp.float32) * s        # query/key/value 1x1 convs
    bqkv = jax.random.normal(ks[4], (3, D), jnp.float32) * s
    walt = jax.random.normal(ks[5], (D, di), jnp.float32) * s
    balt = jax.random.normal(ks[6], (1, di), jnp.float32) * s
    # alter BatchNorm1d: weight=0, bias=0 (as in __init__); running stats = defaults
    misc = jnp.concatenate([balt,
                            jnp.zeros((1, di)), jnp.zeros((1, di)),
                            jnp.zeros((1, di)), jnp.ones((1, di))],
                           axis=0).astype(jnp.float32)                  # (5, di)
    w5 = jax.random.normal(ks[7], (3, dim, dim), jnp.float32) * s       # [tap, Cin(cat order), Cout]
    g5 = jnp.stack([jnp.ones((dim,)), jnp.zeros((dim,))], axis=0).astype(jnp.float32)
    return dict(w123=w123, b123=b123, g123=g123, w4=w4, wqkv=wqkv, bqkv=bqkv,
                walt=walt, misc=misc, w5=w5, g5=g5)


def aggregate_forward(x, params, num_groups=8):
    B, T, dim = x.shape
    di = params["w4"].shape[1]
    D = params["walt"].shape[0]
    assert dim == 4 * di, "Aggregate requires reduction=4 (conv_5 expects Cin == dim)"

    def group_onehot(C):
        cs = C // num_groups
        ch = jnp.arange(C)
        oh = (ch[:, None] // cs == jnp.arange(num_groups)[None, :]).astype(jnp.float32)
        return oh, oh.T

    oh_di, ohT_di = group_onehot(di)
    oh_dim, ohT_dim = group_onehot(dim)

    # Kernel layout: fold the k=3 tap axis into the input-channel axis (tap-major,
    # matching the in-kernel concat order) and cast the matmul weight slabs to
    # bf16 so the MXU runs at native rate and the resident VMEM is halved.
    w123 = params["w123"].reshape(3, 3 * dim, di).astype(jnp.bfloat16)
    w4 = params["w4"].astype(jnp.bfloat16)
    wqkv = params["wqkv"].astype(jnp.bfloat16)
    walt = params["walt"].astype(jnp.bfloat16)
    w5 = params["w5"].reshape(3 * dim, dim).astype(jnp.bfloat16)

    args = (x, w123, params["b123"], params["g123"], oh_di, ohT_di,
            w4, wqkv, params["bqkv"], walt, params["misc"], w5, params["g5"],
            oh_dim, ohT_dim)

    def nbytes(a):
        return int(a.size) * a.dtype.itemsize

    weight_bytes = sum(nbytes(a) for a in args[1:])
    scratch_bytes = ((T + 2 * _PAD) + (T + 2)) * dim * 4
    act_bytes = (T * T * 4                      # attention scores (f32)
                 + 4 * T * di * 4               # the four concatenated parts (f32)
                 + 2 * T * 3 * dim * 2          # (T, 3*dim) bf16 matmul operands
                 + 6 * T * dim * 4)             # x / y5 / working slabs (f32)
    io_bytes = 2 * 2 * T * dim * x.dtype.itemsize   # double-buffered x / out blocks
    vmem_limit = int(min(max(2 * (weight_bytes + scratch_bytes + act_bytes + io_bytes),
                             32 * 1024 * 1024),
                         96 * 1024 * 1024))
    # TODO(synk): at dim=2048 on v7x (64 MiB VMEM) stream w5 / w123 blocks with
    # pltpu.emit_pipeline instead of keeping them fully resident.

    matmul_flops = (3 * 2 * T * (3 * dim) * di      # conv_1..3 (taps fused)
                    + 2 * T * dim * di              # conv_4
                    + 3 * 2 * T * di * D            # query / key / value
                    + 2 * 2 * T * T * D             # attn and attn @ value
                    + 2 * T * D * di                # alter 1x1 conv
                    + 2 * T * (3 * dim) * dim)      # conv_5 (taps fused)
    cost = pl.CostEstimate(flops=B * matmul_flops,
                           transcendentals=B * (4 * di + dim),
                           bytes_accessed=weight_bytes + 2 * nbytes(x))

    # Batch-invariant operands: whole-array VMEM residents (no per-grid-step
    # re-DMA / double-buffering); only x and the output are pipelined over B.
    vmem_whole = pl.BlockSpec(memory_space=pltpu.MemorySpace.VMEM)
    in_specs = [pl.BlockSpec((1, T, dim), lambda b: (b, 0, 0))]
    in_specs += [vmem_whole] * (len(args) - 1)

    return pl.pallas_call(
        aggregate_kernel,
        out_shape=jax.ShapeDtypeStruct((B, T, dim), x.dtype),
        grid=(B,),
        in_specs=in_specs,
        out_specs=pl.BlockSpec((1, T, dim), lambda b: (b, 0, 0)),
        scratch_shapes=[pltpu.VMEM((T + 2 * _PAD, dim), jnp.float32),
                        pltpu.VMEM((T + 2, dim), jnp.float32)],
        compiler_params=pltpu.CompilerParams(
            dimension_semantics=("parallel",),      # megacore shards the batch axis
            vmem_limit_bytes=vmem_limit),
        cost_estimate=cost,
    )(*args)


if __name__ == "__main__":
    key = jax.random.PRNGKey(0)
    kx, kp = jax.random.split(key)
    B, T, dim, reduction = 2, 8, 32, 4        # small shapes; real module uses dim=2048
    x = jax.random.normal(kx, (B, T, dim), jnp.float32)
    params = init_params(kp, dim=dim, reduction=reduction)
    out = aggregate_forward(x, params)
    jax.block_until_ready(out)
    assert out.shape == (B, T, dim) and out.dtype == jnp.float32
    print("KERNEL_OK")
</pallas_src>

<mosaic_0001>
module attributes {stable_mosaic.version = 11 : i64} {
  func.func @aggregate_kernel(%arg0: i32, %arg1: memref<1x8x32xf32, #tpu.memory_space<vmem>>, %arg2: memref<3x96x8xbf16, #tpu.memory_space<vmem>>, %arg3: memref<3x8xf32, #tpu.memory_space<vmem>>, %arg4: memref<3x2x8xf32, #tpu.memory_space<vmem>>, %arg5: memref<8x8xf32, #tpu.memory_space<vmem>>, %arg6: memref<8x8xf32, #tpu.memory_space<vmem>>, %arg7: memref<32x8xbf16, #tpu.memory_space<vmem>>, %arg8: memref<3x8x4xbf16, #tpu.memory_space<vmem>>, %arg9: memref<3x4xf32, #tpu.memory_space<vmem>>, %arg10: memref<4x8xbf16, #tpu.memory_space<vmem>>, %arg11: memref<5x8xf32, #tpu.memory_space<vmem>>, %arg12: memref<96x32xbf16, #tpu.memory_space<vmem>>, %arg13: memref<2x32xf32, #tpu.memory_space<vmem>>, %arg14: memref<32x8xf32, #tpu.memory_space<vmem>>, %arg15: memref<8x32xf32, #tpu.memory_space<vmem>>, %arg16: memref<1x8x32xf32, #tpu.memory_space<vmem>>, %arg17: memref<16x32xf32, #tpu.memory_space<vmem>>, %arg18: memref<10x32xf32, #tpu.memory_space<vmem>>) attributes {dimension_semantics = [#tpu.dimension_semantics<parallel>], iteration_bounds = array<i64: 2>, scalar_prefetch = 0 : i64, scratch_operands = 2 : i64, tpu.core_type = #tpu.core_type<tc>, window_params = [{transform_indices = @transform_0, window_bounds = array<i64: 1, 8, 32>}, {pipeline_mode = #tpu.pipeline_mode<synchronous>, transform_indices = @transform_1, window_bounds = array<i64: 3, 96, 8>}, {pipeline_mode = #tpu.pipeline_mode<synchronous>, transform_indices = @transform_2, window_bounds = array<i64: 3, 8>}, {pipeline_mode = #tpu.pipeline_mode<synchronous>, transform_indices = @transform_3, window_bounds = array<i64: 3, 2, 8>}, {pipeline_mode = #tpu.pipeline_mode<synchronous>, transform_indices = @transform_4, window_bounds = array<i64: 8, 8>}, {pipeline_mode = #tpu.pipeline_mode<synchronous>, transform_indices = @transform_5, window_bounds = array<i64: 8, 8>}, {pipeline_mode = #tpu.pipeline_mode<synchronous>, transform_indices = @transform_6, window_bounds = array<i64: 32, 8>}, {pipeline_mode = #tpu.pipeline_mode<synchronous>, transform_indices = @transform_7, window_bounds = array<i64: 3, 8, 4>}, {pipeline_mode = #tpu.pipeline_mode<synchronous>, transform_indices = @transform_8, window_bounds = array<i64: 3, 4>}, {pipeline_mode = #tpu.pipeline_mode<synchronous>, transform_indices = @transform_9, window_bounds = array<i64: 4, 8>}, {pipeline_mode = #tpu.pipeline_mode<synchronous>, transform_indices = @transform_10, window_bounds = array<i64: 5, 8>}, {pipeline_mode = #tpu.pipeline_mode<synchronous>, transform_indices = @transform_11, window_bounds = array<i64: 96, 32>}, {pipeline_mode = #tpu.pipeline_mode<synchronous>, transform_indices = @transform_12, window_bounds = array<i64: 2, 32>}, {pipeline_mode = #tpu.pipeline_mode<synchronous>, transform_indices = @transform_13, window_bounds = array<i64: 32, 8>}, {pipeline_mode = #tpu.pipeline_mode<synchronous>, transform_indices = @transform_14, window_bounds = array<i64: 8, 32>}, {transform_indices = @transform_15, window_bounds = array<i64: 1, 8, 32>}]} {
    %c0 = arith.constant 0 : index
    %c0_0 = arith.constant 0 : index
    %c0_1 = arith.constant 0 : index
    %0 = vector.load %arg1[%c0, %c0_0, %c0_1] : memref<1x8x32xf32, #tpu.memory_space<vmem>>, vector<1x8x32xf32>
    %1 = vector.shape_cast %0 : vector<1x8x32xf32> to vector<8x32xf32>
    %2 = arith.truncf %1 : vector<8x32xf32> to vector<8x32xbf16>
    %cst = arith.constant 0.000000e+00 : f32
    %3 = vector.broadcast %cst : f32 to vector<4x32xf32>
    %c0_2 = arith.constant 0 : index
    %c0_3 = arith.constant 0 : index
    %4 = vector.load %arg17[%c0_2, %c0_3] : memref<16x32xf32, #tpu.memory_space<vmem>>, vector<4x32xf32>
    tpu.vector_store %arg17[%c0_2, %c0_3], %3 {strides = array<i32>} : memref<16x32xf32, #tpu.memory_space<vmem>>, vector<4x32xf32>,
    %c4 = arith.constant 4 : index
    %c0_4 = arith.constant 0 : index
    %5 = vector.load %arg17[%c4, %c0_4] : memref<16x32xf32, #tpu.memory_space<vmem>>, vector<8x32xf32>
    tpu.vector_store %arg17[%c4, %c0_4], %1 {strides = array<i32>} : memref<16x32xf32, #tpu.memory_space<vmem>>, vector<8x32xf32>,
    %cst_5 = arith.constant 0.000000e+00 : f32
    %6 = vector.broadcast %cst_5 : f32 to vector<4x32xf32>
    %c12 = arith.constant 12 : index
    %c0_6 = arith.constant 0 : index
    %7 = vector.load %arg17[%c12, %c0_6] : memref<16x32xf32, #tpu.memory_space<vmem>>, vector<4x32xf32>
    tpu.vector_store %arg17[%c12, %c0_6], %6 {strides = array<i32>} : memref<16x32xf32, #tpu.memory_space<vmem>>, vector<4x32xf32>,
    %c0_7 = arith.constant 0 : index
    %c0_8 = arith.constant 0 : index
    %8 = vector.load %arg5[%c0_7, %c0_8] : memref<8x8xf32, #tpu.memory_space<vmem>>, vector<8x8xf32>
    %c0_9 = arith.constant 0 : index
    %c0_10 = arith.constant 0 : index
    %9 = vector.load %arg6[%c0_9, %c0_10] : memref<8x8xf32, #tpu.memory_space<vmem>>, vector<8x8xf32>
    %c0_11 = arith.constant 0 : index
    %c0_12 = arith.constant 0 : index
    %10 = vector.load %arg14[%c0_11, %c0_12] : memref<32x8xf32, #tpu.memory_space<vmem>>, vector<32x8xf32>
    %c0_13 = arith.constant 0 : index
    %c0_14 = arith.constant 0 : index
    %11 = vector.load %arg15[%c0_13, %c0_14] : memref<8x32xf32, #tpu.memory_space<vmem>>, vector<8x32xf32>
    %c3 = arith.constant 3 : index
    %c0_15 = arith.constant 0 : index
    %12 = vector.load %arg17[%c3, %c0_15] : memref<16x32xf32, #tpu.memory_space<vmem>>, vector<8x32xf32>
    %c5 = arith.constant 5 : index
    %c0_16 = arith.constant 0 : index
    %13 = vector.load %arg17[%c5, %c0_16] : memref<16x32xf32, #tpu.memory_space<vmem>>, vector<8x32xf32>
    %14 = tpu.concatenate %12, %1, %13 in 1 : vector<8x32xf32>, vector<8x32xf32>, vector<8x32xf32> -> vector<8x96xf32>
    %15 = arith.truncf %14 : vector<8x96xf32> to vector<8x96xbf16>
    %c0_17 = arith.constant 0 : index
    %c0_18 = arith.constant 0 : index
    %c0_19 = arith.constant 0 : index
    %16 = vector.load %arg2[%c0_17, %c0_18, %c0_19] : memref<3x96x8xbf16, #tpu.memory_space<vmem>>, vector<1x96x8xbf16>
    %17 = vector.shape_cast %16 : vector<1x96x8xbf16> to vector<96x8xbf16>
    %cst_20 = arith.constant dense<0.000000e+00> : vector<8x8xf32>
    %18 = tpu.matmul %15, %17, %cst_20 {dimension_numbers = #tpu.dot_dimension_numbers<[1], [0], [0], [1], [0, 0, 1, 1], [], []>} : vector<8x96xbf16>, vector<96x8xbf16>, vector<8x8xf32> -> vector<8x8xf32>
    %c0_21 = arith.constant 0 : index
    %c0_22 = arith.constant 0 : index
    %19 = vector.load %arg3[%c0_21, %c0_22] : memref<3x8xf32, #tpu.memory_space<vmem>>, vector<1x8xf32>
    %20 = vector.broadcast %19 : vector<1x8xf32> to vector<8x8xf32>
    %21 = arith.addf %18, %20 : vector<8x8xf32>
    %c0_23 = arith.constant 0 : index
    %c0_24 = arith.constant 0 : index
    %c0_25 = arith.constant 0 : index
    %22 = vector.load %arg4[%c0_23, %c0_24, %c0_25] : memref<3x2x8xf32, #tpu.memory_space<vmem>>, vector<1x1x8xf32>
    %23 = vector.shape_cast %22 : vector<1x1x8xf32> to vector<1x8xf32>
    %c0_26 = arith.constant 0 : index
    %c1 = arith.constant 1 : index
    %c0_27 = arith.constant 0 : index
    %24 = vector.load %arg4[%c0_26, %c1, %c0_27] : memref<3x2x8xf32, #tpu.memory_space<vmem>>, vector<1x1x8xf32>
    %25 = vector.shape_cast %24 : vector<1x1x8xf32> to vector<1x8xf32>
    %cst_28 = arith.constant dense<0.000000e+00> : vector<8xf32>
    %26 = vector.multi_reduction <add>, %21, %cst_28 [0] : vector<8x8xf32> to vector<8xf32>
    %27 = vector.shape_cast %26 : vector<8xf32> to vector<1x8xf32>
    %28 = arith.mulf %21, %21 : vector<8x8xf32>
    %cst_29 = arith.constant dense<0.000000e+00> : vector<8xf32>
    %29 = vector.multi_reduction <add>, %28, %cst_29 [0] : vector<8x8xf32> to vector<8xf32>
    %30 = vector.shape_cast %29 : vector<8xf32> to vector<1x8xf32>
    %31 = tpu.concatenate %27, %30 in 0 : vector<1x8xf32>, vector<1x8xf32> -> vector<2x8xf32>
    %cst_30 = arith.constant dense<0.000000e+00> : vector<2x8xf32>
    %32 = tpu.matmul %31, %8, %cst_30 {dimension_numbers = #tpu.dot_dimension_numbers<[1], [0], [0], [1], [0, 0, 1, 1], [], []>} : vector<2x8xf32>, vector<8x8xf32>, vector<2x8xf32> -> vector<2x8xf32>
    %cst_31 = arith.constant 8.000000e+00 : f32
    %33 = vector.broadcast %cst_31 : f32 to vector<2x8xf32>
    %34 = arith.divf %32, %33 : vector<2x8xf32>
    %35 = vector.extract_strided_slice %34 {offsets = [0, 0], sizes = [1, 8], strides = [1, 1]} : vector<2x8xf32> to vector<1x8xf32>
    %36 = vector.extract_strided_slice %34 {offsets = [1, 0], sizes = [1, 8], strides = [1, 1]} : vector<2x8xf32> to vector<1x8xf32>
    %37 = arith.mulf %35, %35 : vector<1x8xf32>
    %38 = arith.subf %36, %37 : vector<1x8xf32>
    %cst_32 = arith.constant 0.000000e+00 : f32
    %39 = vector.broadcast %cst_32 : f32 to vector<1x8xf32>
    %40 = arith.maximumf %38, %39 : vector<1x8xf32>
    %41 = tpu.concatenate %35, %40 in 0 : vector<1x8xf32>, vector<1x8xf32> -> vector<2x8xf32>
    %cst_33 = arith.constant dense<0.000000e+00> : vector<2x8xf32>
    %42 = tpu.matmul %41, %9, %cst_33 {dimension_numbers = #tpu.dot_dimension_numbers<[1], [0], [0], [1], [0, 0, 1, 1], [], []>} : vector<2x8xf32>, vector<8x8xf32>, vector<2x8xf32> -> vector<2x8xf32>
    %43 = vector.extract_strided_slice %42 {offsets = [0, 0], sizes = [1, 8], strides = [1, 1]} : vector<2x8xf32> to vector<1x8xf32>
    %44 = vector.broadcast %43 : vector<1x8xf32> to vector<8x8xf32>
    %45 = arith.subf %21, %44 : vector<8x8xf32>
    %46 = vector.extract_strided_slice %42 {offsets = [1, 0], sizes = [1, 8], strides = [1, 1]} : vector<2x8xf32> to vector<1x8xf32>
    %cst_34 = arith.constant 9.99999974E-6 : f32
    %47 = vector.broadcast %cst_34 : f32 to vector<1x8xf32>
    %48 = arith.addf %46, %47 : vector<1x8xf32>
    %49 = math.rsqrt %48 : vector<1x8xf32>
    %50 = vector.broadcast %49 : vector<1x8xf32> to vector<8x8xf32>
    %51 = arith.mulf %45, %50 : vector<8x8xf32>
    %52 = vector.broadcast %23 : vector<1x8xf32> to vector<8x8xf32>
    %53 = arith.mulf %51, %52 : vector<8x8xf32>
    %54 = vector.broadcast %25 : vector<1x8xf32> to vector<8x8xf32>
    %55 = arith.addf %53, %54 : vector<8x8xf32>
    %cst_35 = arith.constant 0.000000e+00 : f32
    %56 = vector.broadcast %cst_35 : f32 to vector<8x8xf32>
    %57 = arith.maximumf %55, %56 : vector<8x8xf32>
    %c2 = arith.constant 2 : index
    %c0_36 = arith.constant 0 : index
    %58 = vector.load %arg17[%c2, %c0_36] : memref<16x32xf32, #tpu.memory_space<vmem>>, vector<8x32xf32>
    %c6 = arith.constant 6 : index
    %c0_37 = arith.constant 0 : index
    %59 = vector.load %arg17[%c6, %c0_37] : memref<16x32xf32, #tpu.memory_space<vmem>>, vector<8x32xf32>
    %60 = tpu.concatenate %58, %1, %59 in 1 : vector<8x32xf32>, vector<8x32xf32>, vector<8x32xf32> -> vector<8x96xf32>
    %61 = arith.truncf %60 : vector<8x96xf32> to vector<8x96xbf16>
    %c1_38 = arith.constant 1 : index
    %c0_39 = arith.constant 0 : index
    %c0_40 = arith.constant 0 : index
    %62 = vector.load %arg2[%c1_38, %c0_39, %c0_40] : memref<3x96x8xbf16, #tpu.memory_space<vmem>>, vector<1x96x8xbf16>
    %63 = vector.shape_cast %62 : vector<1x96x8xbf16> to vector<96x8xbf16>
    %cst_41 = arith.constant dense<0.000000e+00> : vector<8x8xf32>
    %64 = tpu.matmul %61, %63, %cst_41 {dimension_numbers = #tpu.dot_dimension_numbers<[1], [0], [0], [1], [0, 0, 1, 1], [], []>} : vector<8x96xbf16>, vector<96x8xbf16>, vector<8x8xf32> -> vector<8x8xf32>
    %c1_42 = arith.constant 1 : index
    %c0_43 = arith.constant 0 : index
    %65 = vector.load %arg3[%c1_42, %c0_43] : memref<3x8xf32, #tpu.memory_space<vmem>>, vector<1x8xf32>
    %66 = vector.broadcast %65 : vector<1x8xf32> to vector<8x8xf32>
    %67 = arith.addf %64, %66 : vector<8x8xf32>
    %c1_44 = arith.constant 1 : index
    %c0_45 = arith.constant 0 : index
    %c0_46 = arith.constant 0 : index
    %68 = vector.load %arg4[%c1_44, %c0_45, %c0_46] : memref<3x2x8xf32, #tpu.memory_space<vmem>>, vector<1x1x8xf32>
    %69 = vector.shape_cast %68 : vector<1x1x8xf32> to vector<1x8xf32>
    %c1_47 = arith.constant 1 : index
    %c1_48 = arith.constant 1 : index
    %c0_49 = arith.constant 0 : index
    %70 = vector.load %arg4[%c1_47, %c1_48, %c0_49] : memref<3x2x8xf32, #tpu.memory_space<vmem>>, vector<1x1x8xf32>
    %71 = vector.shape_cast %70 : vector<1x1x8xf32> to vector<1x8xf32>
    %cst_50 = arith.constant dense<0.000000e+00> : vector<8xf32>
    %72 = vector.multi_reduction <add>, %67, %cst_50 [0] : vector<8x8xf32> to vector<8xf32>
    %73 = vector.shape_cast %72 : vector<8xf32> to vector<1x8xf32>
    %74 = arith.mulf %67, %67 : vector<8x8xf32>
    %cst_51 = arith.constant dense<0.000000e+00> : vector<8xf32>
    %75 = vector.multi_reduction <add>, %74, %cst_51 [0] : vector<8x8xf32> to vector<8xf32>
    %76 = vector.shape_cast %75 : vector<8xf32> to vector<1x8xf32>
    %77 = tpu.concatenate %73, %76 in 0 : vector<1x8xf32>, vector<1x8xf32> -> vector<2x8xf32>
    %cst_52 = arith.constant dense<0.000000e+00> : vector<2x8xf32>
    %78 = tpu.matmul %77, %8, %cst_52 {dimension_numbers = #tpu.dot_dimension_numbers<[1], [0], [0], [1], [0, 0, 1, 1], [], []>} : vector<2x8xf32>, vector<8x8xf32>, vector<2x8xf32> -> vector<2x8xf32>
    %cst_53 = arith.constant 8.000000e+00 : f32
    %79 = vector.broadcast %cst_53 : f32 to vector<2x8xf32>
    %80 = arith.divf %78, %79 : vector<2x8xf32>
    %81 = vector.extract_strided_slice %80 {offsets = [0, 0], sizes = [1, 8], strides = [1, 1]} : vector<2x8xf32> to vector<1x8xf32>
    %82 = vector.extract_strided_slice %80 {offsets = [1, 0], sizes = [1, 8], strides = [1, 1]} : vector<2x8xf32> to vector<1x8xf32>
    %83 = arith.mulf %81, %81 : vector<1x8xf32>
    %84 = arith.subf %82, %83 : vector<1x8xf32>
    %cst_54 = arith.constant 0.000000e+00 : f32
    %85 = vector.broadcast %cst_54 : f32 to vector<1x8xf32>
    %86 = arith.maximumf %84, %85 : vector<1x8xf32>
    %87 = tpu.concatenate %81, %86 in 0 : vector<1x8xf32>, vector<1x8xf32> -> vector<2x8xf32>
    %cst_55 = arith.constant dense<0.000000e+00> : vector<2x8xf32>
    %88 = tpu.matmul %87, %9, %cst_55 {dimension_numbers = #tpu.dot_dimension_numbers<[1], [0], [0], [1], [0, 0, 1, 1], [], []>} : vector<2x8xf32>, vector<8x8xf32>, vector<2x8xf32> -> vector<2x8xf32>
    %89 = vector.extract_strided_slice %88 {offsets = [0, 0], sizes = [1, 8], strides = [1, 1]} : vector<2x8xf32> to vector<1x8xf32>
    %90 = vector.broadcast %89 : vector<1x8xf32> to vector<8x8xf32>
    %91 = arith.subf %67, %90 : vector<8x8xf32>
    %92 = vector.extract_strided_slice %88 {offsets = [1, 0], sizes = [1, 8], strides = [1, 1]} : vector<2x8xf32> to vector<1x8xf32>
    %cst_56 = arith.constant 9.99999974E-6 : f32
    %93 = vector.broadcast %cst_56 : f32 to vector<1x8xf32>
    %94 = arith.addf %92, %93 : vector<1x8xf32>
    %95 = math.rsqrt %94 : vector<1x8xf32>
    %96 = vector.broadcast %95 : vector<1x8xf32> to vector<8x8xf32>
    %97 = arith.mulf %91, %96 : vector<8x8xf32>
    %98 = vector.broadcast %69 : vector<1x8xf32> to vector<8x8xf32>
    %99 = arith.mulf %97, %98 : vector<8x8xf32>
    %100 = vector.broadcast %71 : vector<1x8xf32> to vector<8x8xf32>
    %101 = arith.addf %99, %100 : vector<8x8xf32>
    %cst_57 = arith.constant 0.000000e+00 : f32
    %102 = vector.broadcast %cst_57 : f32 to vector<8x8xf32>
    %103 = arith.maximumf %101, %102 : vector<8x8xf32>
    %c0_58 = arith.constant 0 : index
    %c0_59 = arith.constant 0 : index
    %104 = vector.load %arg17[%c0_58, %c0_59] : memref<16x32xf32, #tpu.memory_space<vmem>>, vector<8x32xf32>
    %c8 = arith.constant 8 : index
    %c0_60 = arith.constant 0 : index
    %105 = vector.load %arg17[%c8, %c0_60] : memref<16x32xf32, #tpu.memory_space<vmem>>, vector<8x32xf32>
    %106 = tpu.concatenate %104, %1, %105 in 1 : vector<8x32xf32>, vector<8x32xf32>, vector<8x32xf32> -> vector<8x96xf32>
    %107 = arith.truncf %106 : vector<8x96xf32> to vector<8x96xbf16>
    %c2_61 = arith.constant 2 : index
    %c0_62 = arith.constant 0 : index
    %c0_63 = arith.constant 0 : index
    %108 = vector.load %arg2[%c2_61, %c0_62, %c0_63] : memref<3x96x8xbf16, #tpu.memory_space<vmem>>, vector<1x96x8xbf16>
    %109 = vector.shape_cast %108 : vector<1x96x8xbf16> to vector<96x8xbf16>
    %cst_64 = arith.constant dense<0.000000e+00> : vector<8x8xf32>
    %110 = tpu.matmul %107, %109, %cst_64 {dimension_numbers = #tpu.dot_dimension_numbers<[1], [0], [0], [1], [0, 0, 1, 1], [], []>} : vector<8x96xbf16>, vector<96x8xbf16>, vector<8x8xf32> -> vector<8x8xf32>
    %c2_65 = arith.constant 2 : index
    %c0_66 = arith.constant 0 : index
    %111 = vector.load %arg3[%c2_65, %c0_66] : memref<3x8xf32, #tpu.memory_space<vmem>>, vector<1x8xf32>
    %112 = vector.broadcast %111 : vector<1x8xf32> to vector<8x8xf32>
    %113 = arith.addf %110, %112 : vector<8x8xf32>
    %c2_67 = arith.constant 2 : index
    %c0_68 = arith.constant 0 : index
    %c0_69 = arith.constant 0 : index
    %114 = vector.load %arg4[%c2_67, %c0_68, %c0_69] : memref<3x2x8xf32, #tpu.memory_space<vmem>>, vector<1x1x8xf32>
    %115 = vector.shape_cast %114 : vector<1x1x8xf32> to vector<1x8xf32>
    %c2_70 = arith.constant 2 : index
    %c1_71 = arith.constant 1 : index
    %c0_72 = arith.constant 0 : index
    %116 = vector.load %arg4[%c2_70, %c1_71, %c0_72] : memref<3x2x8xf32, #tpu.memory_space<vmem>>, vector<1x1x8xf32>
    %117 = vector.shape_cast %116 : vector<1x1x8xf32> to vector<1x8xf32>
    %cst_73 = arith.constant dense<0.000000e+00> : vector<8xf32>
    %118 = vector.multi_reduction <add>, %113, %cst_73 [0] : vector<8x8xf32> to vector<8xf32>
    %119 = vector.shape_cast %118 : vector<8xf32> to vector<1x8xf32>
    %120 = arith.mulf %113, %113 : vector<8x8xf32>
    %cst_74 = arith.constant dense<0.000000e+00> : vector<8xf32>
    %121 = vector.multi_reduction <add>, %120, %cst_74 [0] : vector<8x8xf32> to vector<8xf32>
    %122 = vector.shape_cast %121 : vector<8xf32> to vector<1x8xf32>
    %123 = tpu.concatenate %119, %122 in 0 : vector<1x8xf32>, vector<1x8xf32> -> vector<2x8xf32>
    %cst_75 = arith.constant dense<0.000000e+00> : vector<2x8xf32>
    %124 = tpu.matmul %123, %8, %cst_75 {dimension_numbers = #tpu.dot_dimension_numbers<[1], [0], [0], [1], [0, 0, 1, 1], [], []>} : vector<2x8xf32>, vector<8x8xf32>, vector<2x8xf32> -> vector<2x8xf32>
    %cst_76 = arith.constant 8.000000e+00 : f32
    %125 = vector.broadcast %cst_76 : f32 to vector<2x8xf32>
    %126 = arith.divf %124, %125 : vector<2x8xf32>
    %127 = vector.extract_strided_slice %126 {offsets = [0, 0], sizes = [1, 8], strides = [1, 1]} : vector<2x8xf32> to vector<1x8xf32>
    %128 = vector.extract_strided_slice %126 {offsets = [1, 0], sizes = [1, 8], strides = [1, 1]} : vector<2x8xf32> to vector<1x8xf32>
    %129 = arith.mulf %127, %127 : vector<1x8xf32>
    %130 = arith.subf %128, %129 : vector<1x8xf32>
    %cst_77 = arith.constant 0.000000e+00 : f32
    %131 = vector.broadcast %cst_77 : f32 to vector<1x8xf32>
    %132 = arith.maximumf %130, %131 : vector<1x8xf32>
    %133 = tpu.concatenate %127, %132 in 0 : vector<1x8xf32>, vector<1x8xf32> -> vector<2x8xf32>
    %cst_78 = arith.constant dense<0.000000e+00> : vector<2x8xf32>
    %134 = tpu.matmul %133, %9, %cst_78 {dimension_numbers = #tpu.dot_dimension_numbers<[1], [0], [0], [1], [0, 0, 1, 1], [], []>} : vector<2x8xf32>, vector<8x8xf32>, vector<2x8xf32> -> vector<2x8xf32>
    %135 = vector.extract_strided_slice %134 {offsets = [0, 0], sizes = [1, 8], strides = [1, 1]} : vector<2x8xf32> to vector<1x8xf32>
    %136 = vector.broadcast %135 : vector<1x8xf32> to vector<8x8xf32>
    %137 = arith.subf %113, %136 : vector<8x8xf32>
    %138 = vector.extract_strided_slice %134 {offsets = [1, 0], sizes = [1, 8], strides = [1, 1]} : vector<2x8xf32> to vector<1x8xf32>
    %cst_79 = arith.constant 9.99999974E-6 : f32
    %139 = vector.broadcast %cst_79 : f32 to vector<1x8xf32>
    %140 = arith.addf %138, %139 : vector<1x8xf32>
    %141 = math.rsqrt %140 : vector<1x8xf32>
    %142 = vector.broadcast %141 : vector<1x8xf32> to vector<8x8xf32>
    %143 = arith.mulf %137, %142 : vector<8x8xf32>
    %144 = vector.broadcast %115 : vector<1x8xf32> to vector<8x8xf32>
    %145 = arith.mulf %143, %144 : vector<8x8xf32>
    %146 = vector.broadcast %117 : vector<1x8xf32> to vector<8x8xf32>
    %147 = arith.addf %145, %146 : vector<8x8xf32>
    %cst_80 = arith.constant 0.000000e+00 : f32
    %148 = vector.broadcast %cst_80 : f32 to vector<8x8xf32>
    %149 = arith.maximumf %147, %148 : vector<8x8xf32>
    %c0_81 = arith.constant 0 : index
    %c0_82 = arith.constant 0 : index
    %150 = vector.load %arg7[%c0_81, %c0_82] : memref<32x8xbf16, #tpu.memory_space<vmem>>, vector<32x8xbf16>
    %cst_83 = arith.constant dense<0.000000e+00> : vector<8x8xf32>
    %151 = tpu.matmul %2, %150, %cst_83 {dimension_numbers = #tpu.dot_dimension_numbers<[1], [0], [0], [1], [0, 0, 1, 1], [], []>} : vector<8x32xbf16>, vector<32x8xbf16>, vector<8x8xf32> -> vector<8x8xf32>
    %cst_84 = arith.constant 0.000000e+00 : f32
    %152 = vector.broadcast %cst_84 : f32 to vector<8x8xf32>
    %153 = arith.maximumf %151, %152 : vector<8x8xf32>
    %154 = arith.truncf %153 : vector<8x8xf32> to vector<8x8xbf16>
    %c0_85 = arith.constant 0 : index
    %c0_86 = arith.constant 0 : index
    %c0_87 = arith.constant 0 : index
    %155 = vector.load %arg8[%c0_85, %c0_86, %c0_87] : memref<3x8x4xbf16, #tpu.memory_space<vmem>>, vector<1x8x4xbf16>
    %156 = vector.shape_cast %155 : vector<1x8x4xbf16> to vector<8x4xbf16>
    %cst_88 = arith.constant dense<0.000000e+00> : vector<8x4xf32>
    %157 = tpu.matmul %154, %156, %cst_88 {dimension_numbers = #tpu.dot_dimension_numbers<[1], [0], [0], [1], [0, 0, 1, 1], [], []>} : vector<8x8xbf16>, vector<8x4xbf16>, vector<8x4xf32> -> vector<8x4xf32>
    %c0_89 = arith.constant 0 : index
    %c0_90 = arith.constant 0 : index
    %158 = vector.load %arg9[%c0_89, %c0_90] : memref<3x4xf32, #tpu.memory_space<vmem>>, vector<1x4xf32>
    %159 = vector.broadcast %158 : vector<1x4xf32> to vector<8x4xf32>
    %160 = arith.addf %157, %159 : vector<8x4xf32>
    %c1_91 = arith.constant 1 : index
    %c0_92 = arith.constant 0 : index
    %c0_93 = arith.constant 0 : index
    %161 = vector.load %arg8[%c1_91, %c0_92, %c0_93] : memref<3x8x4xbf16, #tpu.memory_space<vmem>>, vector<1x8x4xbf16>
    %162 = vector.shape_cast %161 : vector<1x8x4xbf16> to vector<8x4xbf16>
    %cst_94 = arith.constant dense<0.000000e+00> : vector<8x4xf32>
    %163 = tpu.matmul %154, %162, %cst_94 {dimension_numbers = #tpu.dot_dimension_numbers<[1], [0], [0], [1], [0, 0, 1, 1], [], []>} : vector<8x8xbf16>, vector<8x4xbf16>, vector<8x4xf32> -> vector<8x4xf32>
    %c1_95 = arith.constant 1 : index
    %c0_96 = arith.constant 0 : index
    %164 = vector.load %arg9[%c1_95, %c0_96] : memref<3x4xf32, #tpu.memory_space<vmem>>, vector<1x4xf32>
    %165 = vector.broadcast %164 : vector<1x4xf32> to vector<8x4xf32>
    %166 = arith.addf %163, %165 : vector<8x4xf32>
    %c2_97 = arith.constant 2 : index
    %c0_98 = arith.constant 0 : index
    %c0_99 = arith.constant 0 : index
    %167 = vector.load %arg8[%c2_97, %c0_98, %c0_99] : memref<3x8x4xbf16, #tpu.memory_space<vmem>>, vector<1x8x4xbf16>
    %168 = vector.shape_cast %167 : vector<1x8x4xbf16> to vector<8x4xbf16>
    %cst_100 = arith.constant dense<0.000000e+00> : vector<8x4xf32>
    %169 = tpu.matmul %154, %168, %cst_100 {dimension_numbers = #tpu.dot_dimension_numbers<[1], [0], [0], [1], [0, 0, 1, 1], [], []>} : vector<8x8xbf16>, vector<8x4xbf16>, vector<8x4xf32> -> vector<8x4xf32>
    %c2_101 = arith.constant 2 : index
    %c0_102 = arith.constant 0 : index
    %170 = vector.load %arg9[%c2_101, %c0_102] : memref<3x4xf32, #tpu.memory_space<vmem>>, vector<1x4xf32>
    %171 = vector.broadcast %170 : vector<1x4xf32> to vector<8x4xf32>
    %172 = arith.addf %169, %171 : vector<8x4xf32>
    %173 = arith.truncf %160 : vector<8x4xf32> to vector<8x4xbf16>
    %174 = arith.truncf %166 : vector<8x4xf32> to vector<8x4xbf16>
    %cst_103 = arith.constant dense<0.000000e+00> : vector<8x8xf32>
    %175 = tpu.matmul %173, %174, %cst_103 {dimension_numbers = #tpu.dot_dimension_numbers<[1], [1], [0], [0], [0, 0, 1, 0], [], []>} : vector<8x4xbf16>, vector<8x4xbf16>, vector<8x8xf32> -> vector<8x8xf32>
    %cst_104 = arith.constant 1.250000e-01 : f32
    %176 = vector.broadcast %cst_104 : f32 to vector<8x8xf32>
    %177 = arith.mulf %175, %176 : vector<8x8xf32>
    %178 = arith.truncf %177 : vector<8x8xf32> to vector<8x8xbf16>
    %179 = arith.truncf %172 : vector<8x4xf32> to vector<8x4xbf16>
    %cst_105 = arith.constant dense<0.000000e+00> : vector<8x4xf32>
    %180 = tpu.matmul %178, %179, %cst_105 {dimension_numbers = #tpu.dot_dimension_numbers<[1], [0], [0], [1], [0, 0, 1, 1], [], []>} : vector<8x8xbf16>, vector<8x4xbf16>, vector<8x4xf32> -> vector<8x4xf32>
    %181 = arith.truncf %180 : vector<8x4xf32> to vector<8x4xbf16>
    %c0_106 = arith.constant 0 : index
    %c0_107 = arith.constant 0 : index
    %182 = vector.load %arg10[%c0_106, %c0_107] : memref<4x8xbf16, #tpu.memory_space<vmem>>, vector<4x8xbf16>
    %cst_108 = arith.constant dense<0.000000e+00> : vector<8x8xf32>
    %183 = tpu.matmul %181, %182, %cst_108 {dimension_numbers = #tpu.dot_dimension_numbers<[1], [0], [0], [1], [0, 0, 1, 1], [], []>} : vector<8x4xbf16>, vector<4x8xbf16>, vector<8x8xf32> -> vector<8x8xf32>
    %c0_109 = arith.constant 0 : index
    %c0_110 = arith.constant 0 : index
    %184 = vector.load %arg11[%c0_109, %c0_110] : memref<5x8xf32, #tpu.memory_space<vmem>>, vector<1x8xf32>
    %185 = vector.broadcast %184 : vector<1x8xf32> to vector<8x8xf32>
    %186 = arith.addf %183, %185 : vector<8x8xf32>
    %c1_111 = arith.constant 1 : index
    %c0_112 = arith.constant 0 : index
    %187 = vector.load %arg11[%c1_111, %c0_112] : memref<5x8xf32, #tpu.memory_space<vmem>>, vector<1x8xf32>
    %c2_113 = arith.constant 2 : index
    %c0_114 = arith.constant 0 : index
    %188 = vector.load %arg11[%c2_113, %c0_114] : memref<5x8xf32, #tpu.memory_space<vmem>>, vector<1x8xf32>
    %c3_115 = arith.constant 3 : index
    %c0_116 = arith.constant 0 : index
    %189 = vector.load %arg11[%c3_115, %c0_116] : memref<5x8xf32, #tpu.memory_space<vmem>>, vector<1x8xf32>
    %c4_117 = arith.constant 4 : index
    %c0_118 = arith.constant 0 : index
    %190 = vector.load %arg11[%c4_117, %c0_118] : memref<5x8xf32, #tpu.memory_space<vmem>>, vector<1x8xf32>
    %191 = vector.broadcast %189 : vector<1x8xf32> to vector<8x8xf32>
    %192 = arith.subf %186, %191 : vector<8x8xf32>
    %cst_119 = arith.constant 9.99999974E-6 : f32
    %193 = vector.broadcast %cst_119 : f32 to vector<1x8xf32>
    %194 = arith.addf %190, %193 : vector<1x8xf32>
    %195 = math.rsqrt %194 : vector<1x8xf32>
    %196 = vector.broadcast %195 : vector<1x8xf32> to vector<8x8xf32>
    %197 = arith.mulf %192, %196 : vector<8x8xf32>
    %198 = vector.broadcast %187 : vector<1x8xf32> to vector<8x8xf32>
    %199 = arith.mulf %197, %198 : vector<8x8xf32>
    %200 = vector.broadcast %188 : vector<1x8xf32> to vector<8x8xf32>
    %201 = arith.addf %199, %200 : vector<8x8xf32>
    %202 = arith.addf %201, %153 : vector<8x8xf32>
    %203 = tpu.concatenate %57, %103, %149, %202 in 1 : vector<8x8xf32>, vector<8x8xf32>, vector<8x8xf32>, vector<8x8xf32> -> vector<8x32xf32>
    %cst_120 = arith.constant 0.000000e+00 : f32
    %204 = vector.broadcast %cst_120 : f32 to vector<1x32xf32>
    %c0_121 = arith.constant 0 : index
    %c0_122 = arith.constant 0 : index
    %205 = vector.load %arg18[%c0_121, %c0_122] : memref<10x32xf32, #tpu.memory_space<vmem>>, vector<1x32xf32>
    tpu.vector_store %arg18[%c0_121, %c0_122], %204 {strides = array<i32>} : memref<10x32xf32, #tpu.memory_space<vmem>>, vector<1x32xf32>,
    %c1_123 = arith.constant 1 : index
    %c0_124 = arith.constant 0 : index
    %206 = vector.load %arg18[%c1_123, %c0_124] : memref<10x32xf32, #tpu.memory_space<vmem>>, vector<8x32xf32>
    tpu.vector_store %arg18[%c1_123, %c0_124], %203 {strides = array<i32>} : memref<10x32xf32, #tpu.memory_space<vmem>>, vector<8x32xf32>,
    %cst_125 = arith.constant 0.000000e+00 : f32
    %207 = vector.broadcast %cst_125 : f32 to vector<1x32xf32>
    %c9 = arith.constant 9 : index
    %c0_126 = arith.constant 0 : index
    %208 = vector.load %arg18[%c9, %c0_126] : memref<10x32xf32, #tpu.memory_space<vmem>>, vector<1x32xf32>
    tpu.vector_store %arg18[%c9, %c0_126], %207 {strides = array<i32>} : memref<10x32xf32, #tpu.memory_space<vmem>>, vector<1x32xf32>,
    %c0_127 = arith.constant 0 : index
    %c0_128 = arith.constant 0 : index
    %209 = vector.load %arg18[%c0_127, %c0_128] : memref<10x32xf32, #tpu.memory_space<vmem>>, vector<8x32xf32>
    %c2_129 = arith.constant 2 : index
    %c0_130 = arith.constant 0 : index
    %210 = vector.load %arg18[%c2_129, %c0_130] : memref<10x32xf32, #tpu.memory_space<vmem>>, vector<8x32xf32>
    %211 = tpu.concatenate %209, %203, %210 in 1 : vector<8x32xf32>, vector<8x32xf32>, vector<8x32xf32> -> vector<8x96xf32>
    %212 = arith.truncf %211 : vector<8x96xf32> to vector<8x96xbf16>
    %c0_131 = arith.constant 0 : index
    %c0_132 = arith.constant 0 : index
    %213 = vector.load %arg12[%c0_131, %c0_132] : memref<96x32xbf16, #tpu.memory_space<vmem>>, vector<96x32xbf16>
    %cst_133 = arith.constant dense<0.000000e+00> : vector<8x32xf32>
    %214 = tpu.matmul %212, %213, %cst_133 {dimension_numbers = #tpu.dot_dimension_numbers<[1], [0], [0], [1], [0, 0, 1, 1], [], []>} : vector<8x96xbf16>, vector<96x32xbf16>, vector<8x32xf32> -> vector<8x32xf32>
    %c0_134 = arith.constant 0 : index
    %c0_135 = arith.constant 0 : index
    %215 = vector.load %arg13[%c0_134, %c0_135] : memref<2x32xf32, #tpu.memory_space<vmem>>, vector<1x32xf32>
    %c1_136 = arith.constant 1 : index
    %c0_137 = arith.constant 0 : index
    %216 = vector.load %arg13[%c1_136, %c0_137] : memref<2x32xf32, #tpu.memory_space<vmem>>, vector<1x32xf32>
    %cst_138 = arith.constant dense<0.000000e+00> : vector<32xf32>
    %217 = vector.multi_reduction <add>, %214, %cst_138 [0] : vector<8x32xf32> to vector<32xf32>
    %218 = vector.shape_cast %217 : vector<32xf32> to vector<1x32xf32>
    %219 = arith.mulf %214, %214 : vector<8x32xf32>
    %cst_139 = arith.constant dense<0.000000e+00> : vector<32xf32>
    %220 = vector.multi_reduction <add>, %219, %cst_139 [0] : vector<8x32xf32> to vector<32xf32>
    %221 = vector.shape_cast %220 : vector<32xf32> to vector<1x32xf32>
    %222 = tpu.concatenate %218, %221 in 0 : vector<1x32xf32>, vector<1x32xf32> -> vector<2x32xf32>
    %cst_140 = arith.constant dense<0.000000e+00> : vector<2x8xf32>
    %223 = tpu.matmul %222, %10, %cst_140 {dimension_numbers = #tpu.dot_dimension_numbers<[1], [0], [0], [1], [0, 0, 1, 1], [], []>} : vector<2x32xf32>, vector<32x8xf32>, vector<2x8xf32> -> vector<2x8xf32>
    %cst_141 = arith.constant 3.200000e+01 : f32
    %224 = vector.broadcast %cst_141 : f32 to vector<2x8xf32>
    %225 = arith.divf %223, %224 : vector<2x8xf32>
    %226 = vector.extract_strided_slice %225 {offsets = [0, 0], sizes = [1, 8], strides = [1, 1]} : vector<2x8xf32> to vector<1x8xf32>
    %227 = vector.extract_strided_slice %225 {offsets = [1, 0], sizes = [1, 8], strides = [1, 1]} : vector<2x8xf32> to vector<1x8xf32>
    %228 = arith.mulf %226, %226 : vector<1x8xf32>
    %229 = arith.subf %227, %228 : vector<1x8xf32>
    %cst_142 = arith.constant 0.000000e+00 : f32
    %230 = vector.broadcast %cst_142 : f32 to vector<1x8xf32>
    %231 = arith.maximumf %229, %230 : vector<1x8xf32>
    %232 = tpu.concatenate %226, %231 in 0 : vector<1x8xf32>, vector<1x8xf32> -> vector<2x8xf32>
    %cst_143 = arith.constant dense<0.000000e+00> : vector<2x32xf32>
    %233 = tpu.matmul %232, %11, %cst_143 {dimension_numbers = #tpu.dot_dimension_numbers<[1], [0], [0], [1], [0, 0, 1, 1], [], []>} : vector<2x8xf32>, vector<8x32xf32>, vector<2x32xf32> -> vector<2x32xf32>
    %234 = vector.extract_strided_slice %233 {offsets = [0, 0], sizes = [1, 32], strides = [1, 1]} : vector<2x32xf32> to vector<1x32xf32>
    %235 = vector.broadcast %234 : vector<1x32xf32> to vector<8x32xf32>
    %236 = arith.subf %214, %235 : vector<8x32xf32>
    %237 = vector.extract_strided_slice %233 {offsets = [1, 0], sizes = [1, 32], strides = [1, 1]} : vector<2x32xf32> to vector<1x32xf32>
    %cst_144 = arith.constant 9.99999974E-6 : f32
    %238 = vector.broadcast %cst_144 : f32 to vector<1x32xf32>
    %239 = arith.addf %237, %238 : vector<1x32xf32>
    %240 = math.rsqrt %239 : vector<1x32xf32>
    %241 = vector.broadcast %240 : vector<1x32xf32> to vector<8x32xf32>
    %242 = arith.mulf %236, %241 : vector<8x32xf32>
    %243 = vector.broadcast %215 : vector<1x32xf32> to vector<8x32xf32>
    %244 = arith.mulf %242, %243 : vector<8x32xf32>
    %245 = vector.broadcast %216 : vector<1x32xf32> to vector<8x32xf32>
    %246 = arith.addf %244, %245 : vector<8x32xf32>
    %cst_145 = arith.constant 0.000000e+00 : f32
    %247 = vector.broadcast %cst_145 : f32 to vector<8x32xf32>
    %248 = arith.maximumf %246, %247 : vector<8x32xf32>
    %249 = arith.addf %248, %1 : vector<8x32xf32>
    %c0_146 = arith.constant 0 : index
    %c0_147 = arith.constant 0 : index
    %c0_148 = arith.constant 0 : index
    %250 = vector.load %arg16[%c0_146, %c0_147, %c0_148] : memref<1x8x32xf32, #tpu.memory_space<vmem>>, vector<1x8x32xf32>
    %251 = vector.shape_cast %250 : vector<1x8x32xf32> to vector<8x32xf32>
    %252 = vector.shape_cast %249 : vector<8x32xf32> to vector<1x8x32xf32>
    tpu.vector_store %arg16[%c0_146, %c0_147, %c0_148], %252 {strides = array<i32>} : memref<1x8x32xf32, #tpu.memory_space<vmem>>, vector<1x8x32xf32>,
    return
  }
  func.func @transform_0(%arg0: i32) -> (i32, i32, i32) {
    %c0_i32 = arith.constant 0 : i32
    %c0_i32_0 = arith.constant 0 : i32
    %c0_i32_1 = arith.constant 0 : i32
    return %arg0, %c0_i32, %c0_i32_0 : i32, i32, i32
  }
  func.func @transform_1(%arg0: i32) -> (i32, i32, i32) {
    %c0_i32 = arith.constant 0 : i32
    %c0_i32_0 = arith.constant 0 : i32
    %c0_i32_1 = arith.constant 0 : i32
    %c0_i32_2 = arith.constant 0 : i32
    return %c0_i32, %c0_i32_0, %c0_i32_1 : i32, i32, i32
  }
  func.func @transform_2(%arg0: i32) -> (i32, i32) {
    %c0_i32 = arith.constant 0 : i32
    %c0_i32_0 = arith.constant 0 : i32
    %c0_i32_1 = arith.constant 0 : i32
    return %c0_i32, %c0_i32_0 : i32, i32
  }
  func.func @transform_3(%arg0: i32) -> (i32, i32, i32) {
    %c0_i32 = arith.constant 0 : i32
    %c0_i32_0 = arith.constant 0 : i32
    %c0_i32_1 = arith.constant 0 : i32
    %c0_i32_2 = arith.constant 0 : i32
    return %c0_i32, %c0_i32_0, %c0_i32_1 : i32, i32, i32
  }
  func.func @transform_4(%arg0: i32) -> (i32, i32) {
    %c0_i32 = arith.constant 0 : i32
    %c0_i32_0 = arith.constant 0 : i32
    %c0_i32_1 = arith.constant 0 : i32
    return %c0_i32, %c0_i32_0 : i32, i32
  }
  func.func @transform_5(%arg0: i32) -> (i32, i32) {
    %c0_i32 = arith.constant 0 : i32
    %c0_i32_0 = arith.constant 0 : i32
    %c0_i32_1 = arith.constant 0 : i32
    return %c0_i32, %c0_i32_0 : i32, i32
  }
  func.func @transform_6(%arg0: i32) -> (i32, i32) {
    %c0_i32 = arith.constant 0 : i32
    %c0_i32_0 = arith.constant 0 : i32
    %c0_i32_1 = arith.constant 0 : i32
    return %c0_i32, %c0_i32_0 : i32, i32
  }
  func.func @transform_7(%arg0: i32) -> (i32, i32, i32) {
    %c0_i32 = arith.constant 0 : i32
    %c0_i32_0 = arith.constant 0 : i32
    %c0_i32_1 = arith.constant 0 : i32
    %c0_i32_2 = arith.constant 0 : i32
    return %c0_i32, %c0_i32_0, %c0_i32_1 : i32, i32, i32
  }
  func.func @transform_8(%arg0: i32) -> (i32, i32) {
    %c0_i32 = arith.constant 0 : i32
    %c0_i32_0 = arith.constant 0 : i32
    %c0_i32_1 = arith.constant 0 : i32
    return %c0_i32, %c0_i32_0 : i32, i32
  }
  func.func @transform_9(%arg0: i32) -> (i32, i32) {
    %c0_i32 = arith.constant 0 : i32
    %c0_i32_0 = arith.constant 0 : i32
    %c0_i32_1 = arith.constant 0 : i32
    return %c0_i32, %c0_i32_0 : i32, i32
  }
  func.func @transform_10(%arg0: i32) -> (i32, i32) {
    %c0_i32 = arith.constant 0 : i32
    %c0_i32_0 = arith.constant 0 : i32
    %c0_i32_1 = arith.constant 0 : i32
    return %c0_i32, %c0_i32_0 : i32, i32
  }
  func.func @transform_11(%arg0: i32) -> (i32, i32) {
    %c0_i32 = arith.constant 0 : i32
    %c0_i32_0 = arith.constant 0 : i32
    %c0_i32_1 = arith.constant 0 : i32
    return %c0_i32, %c0_i32_0 : i32, i32
  }
  func.func @transform_12(%arg0: i32) -> (i32, i32) {
    %c0_i32 = arith.constant 0 : i32
    %c0_i32_0 = arith.constant 0 : i32
    %c0_i32_1 = arith.constant 0 : i32
    return %c0_i32, %c0_i32_0 : i32, i32
  }
  func.func @transform_13(%arg0: i32) -> (i32, i32) {
    %c0_i32 = arith.constant 0 : i32
    %c0_i32_0 = arith.constant 0 : i32
    %c0_i32_1 = arith.constant 0 : i32
    return %c0_i32, %c0_i32_0 : i32, i32
  }
  func.func @transform_14(%arg0: i32) -> (i32, i32) {
    %c0_i32 = arith.constant 0 : i32
    %c0_i32_0 = arith.constant 0 : i32
    %c0_i32_1 = arith.constant 0 : i32
    return %c0_i32, %c0_i32_0 : i32, i32
  }
  func.func @transform_15(%arg0: i32) -> (i32, i32, i32) {
    %c0_i32 = arith.constant 0 : i32
    %c0_i32_0 = arith.constant 0 : i32
    %c0_i32_1 = arith.constant 0 : i32
    return %arg0, %c0_i32, %c0_i32_0 : i32, i32, i32
  }
}

</mosaic_0001>

<llo_original>
// kernel: tpu_custom_call.1
$region0: #{tpu_custom_call.1}
  #allocation0 [shape = 'u32[]', space=smem, size = 0x4, offset = 0x4, fixed_abs, tag = 'smem constant byte address 0x4 - core index']
  #allocation1 [shape = 'u32[72,128]{1,0:T(1,128)}', space=vmem, size = 0x9000, scoped, tag = 'internal scratch']
  #allocation2 [shape = 'f32[16,32]{1,0:T(8,128)}', space=vmem, size = 0x2000, scoped, tag = 'scratch operand']
  #allocation3 [shape = 'f32[10,32]{1,0:T(8,128)}', space=vmem, size = 0x2000, scoped, tag = 'scratch operand']
  %s0 = inlined_call_operand.vmem [shape: f32[2,8,32], index: 0, kind: input, shape index: {}]
  %s1 = inlined_call_operand.vmem [shape: bf16[3,96,8], index: 1, kind: input, shape index: {}]
  %s2 = inlined_call_operand.vmem [shape: f32[3,8], index: 2, kind: input, shape index: {}]
  %s3 = inlined_call_operand.vmem [shape: f32[3,2,8], index: 3, kind: input, shape index: {}]
  %s4 = inlined_call_operand.vmem [shape: f32[8,8], index: 4, kind: input, shape index: {}]
  %s5 = inlined_call_operand.vmem [shape: f32[8,8], index: 5, kind: input, shape index: {}]
  %s6 = inlined_call_operand.vmem [shape: bf16[32,8], index: 6, kind: input, shape index: {}]
  %s7 = inlined_call_operand.vmem [shape: bf16[3,8,4], index: 7, kind: input, shape index: {}]
  %s8 = inlined_call_operand.vmem [shape: f32[3,4], index: 8, kind: input, shape index: {}]
  %s9 = inlined_call_operand.vmem [shape: bf16[4,8], index: 9, kind: input, shape index: {}]
  %s10 = inlined_call_operand.vmem [shape: f32[5,8], index: 10, kind: input, shape index: {}]
  %s11 = inlined_call_operand.vmem [shape: bf16[96,32], index: 11, kind: input, shape index: {}]
  %s12 = inlined_call_operand.vmem [shape: f32[2,32], index: 12, kind: input, shape index: {}]
  %s13 = inlined_call_operand.vmem [shape: f32[32,8], index: 13, kind: input, shape index: {}]
  %s14 = inlined_call_operand.vmem [shape: f32[8,32], index: 14, kind: input, shape index: {}]
  %s15 = inlined_call_operand.hbm [shape: f32[2,8,32], index: 15, kind: output, shape index: {}]
  %s16 = sld [smem:[#allocation0]]
  $region93: #{tpu_custom_call.1} parent=0
    _
  %s18 = ssub.s32 1, %s16
  %s19 = scalar_select 0, %s18, %s16
  $region1: #{tpu_custom_call.1} parent=0
    #allocation4 [shape = 'u8[8192]{0}', space=vmem, size = 0x2000, scoped, tag = 'output window, operand 0']
    #allocation5 [shape = 's32[2]{0}', space=sflag, size = 0x8, scoped, tag = 'scoped memory for tpu_custom_call.1']
    %20 = vsyncpa [#allocation5], 0
    %s21 = scalar_lea.sflag [#allocation5], 1
    %22 = vsyncpa %s21, 0
    loop: start=0, step=1, limit=4
    $region2: #{tpu_custom_call.1} parent=1 // loop_pre_header
      _
    $region3: #{tpu_custom_call.1} parent=1 // loop_header
      %s24 = sphi 0, %s28
      %p25 = scmp.ge.s32.totalorder %s24, 4
      %s34 = sphi 0, %s36
      %s37 = sphi 0, %s34
      %s38 = sphi 0, %s37
      %s54 = sphi 0, %s38
      %s58 = sphi 0, %s58
      %s60 = sphi 0, %s58
      %s61 = sphi 0, %s60
      %s75 = sphi 0, %s61
      %s79 = sphi 0, %s79
      %s81 = sphi 0, %s79
      %s82 = sphi 0, %s81
      %s96 = sphi 0, %s82
      %s100 = sphi 0, %s100
      %s102 = sphi 0, %s100
      %s103 = sphi 0, %s102
      %s117 = sphi 0, %s103
      %s121 = sphi 0, %s121
      %s123 = sphi 0, %s121
      %s124 = sphi 0, %s123
      %s138 = sphi 0, %s124
      %s142 = sphi 0, %s142
      %s144 = sphi 0, %s142
      %s145 = sphi 0, %s144
      %s159 = sphi 0, %s145
      %s163 = sphi 0, %s163
      %s165 = sphi 0, %s163
      %s166 = sphi 0, %s165
      %s180 = sphi 0, %s166
      %s184 = sphi 0, %s184
      %s186 = sphi 0, %s184
      %s187 = sphi 0, %s186
      %s201 = sphi 0, %s187
      %s205 = sphi 0, %s205
      %s207 = sphi 0, %s205
      %s208 = sphi 0, %s207
      %s222 = sphi 0, %s208
      %s226 = sphi 0, %s226
      %s228 = sphi 0, %s226
      %s229 = sphi 0, %s228
      %s243 = sphi 0, %s229
      %s247 = sphi 0, %s247
      %s249 = sphi 0, %s247
      %s250 = sphi 0, %s249
      %s264 = sphi 0, %s250
      %s268 = sphi 0, %s268
      %s270 = sphi 0, %s268
      %s271 = sphi 0, %s270
      %s285 = sphi 0, %s271
      %s289 = sphi 0, %s289
      %s291 = sphi 0, %s289
      %s292 = sphi 0, %s291
      %s306 = sphi 0, %s292
      %s310 = sphi 0, %s310
      %s312 = sphi 0, %s310
      %s313 = sphi 0, %s312
      %s327 = sphi 0, %s313
      %s331 = sphi 0, %s331
      %s333 = sphi 0, %s331
      %s334 = sphi 0, %s333
      %s348 = sphi 0, %s334
      %s354 = sphi 0, %s356
      %s357 = sphi 0, %s354
      %s358 = sphi 0, %s357
      %s374 = sphi 0, %s358
    $region4: #{tpu_custom_call.1} parent=1 // loop_header_branch
      %27 = sbr.rel (%p25) target = $region8
    $region5: #{tpu_custom_call.1} parent=1 // loop_body
      %s29 = ssub.s32 %s24, 1
      %s30 = ssub.s32 %s24, 2
      %s31 = sadd.s32 %s24, 1
      %s32 = ssub.s32 %s24, %s31
      %p33 = scmp.eq.s32.totalorder %s32, 0
      %s35 = sadd.s32 %s34, 1
      %s36 = scalar_select %p33, %s34, %s35
      %p39 = pneg %p33
      %p40 = scmp.eq.s32.totalorder %s24, 1
      %p41 = por %p39, %p40
      %p42 = scmp.ne.s32.totalorder %s34, %s37
      %p43 = scmp.eq.s32.totalorder %s24, 0
      %p44 = por %p42, %p43
      %p45 = scmp.ne.s32.totalorder %s34, %s37
      %p46 = scmp.eq.s32.totalorder %s29, 1
      %p47 = por %p45, %p46
      %p48 = scmp.ne.s32.totalorder %s37, %s38
      %p49 = scmp.eq.s32.totalorder %s29, 0
      %p50 = por %p48, %p49
      %p51 = scmp.ne.s32.totalorder %s37, %s38
      %p52 = scmp.eq.s32.totalorder %s30, 1
      %p53 = por %p51, %p52
      %p55 = scmp.ne.s32.totalorder %s38, %s54
      %p56 = scmp.eq.s32.totalorder %s30, 0
      %p57 = por %p55, %p56
      %s59 = sadd.s32 %s58, 1
      %p62 = scmp.eq.s32.totalorder %s24, 1
      %p63 = scmp.ne.s32.totalorder %s58, %s60
      %p64 = scmp.eq.s32.totalorder %s24, 0
      %p65 = por %p63, %p64
      %p66 = scmp.ne.s32.totalorder %s58, %s60
      %p67 = scmp.eq.s32.totalorder %s29, 1
      %p68 = por %p66, %p67
      %p69 = scmp.ne.s32.totalorder %s60, %s61
      %p70 = scmp.eq.s32.totalorder %s29, 0
      %p71 = por %p69, %p70
      %p72 = scmp.ne.s32.totalorder %s60, %s61
      %p73 = scmp.eq.s32.totalorder %s30, 1
      %p74 = por %p72, %p73
      %p76 = scmp.ne.s32.totalorder %s61, %s75
      %p77 = scmp.eq.s32.totalorder %s30, 0
      %p78 = por %p76, %p77
      %s80 = sadd.s32 %s79, 1
      %p83 = scmp.eq.s32.totalorder %s24, 1
      %p84 = scmp.ne.s32.totalorder %s79, %s81
      %p85 = scmp.eq.s32.totalorder %s24, 0
      %p86 = por %p84, %p85
      %p87 = scmp.ne.s32.totalorder %s79, %s81
      %p88 = scmp.eq.s32.totalorder %s29, 1
      %p89 = por %p87, %p88
      %p90 = scmp.ne.s32.totalorder %s81, %s82
      %p91 = scmp.eq.s32.totalorder %s29, 0
      %p92 = por %p90, %p91
      %p93 = scmp.ne.s32.totalorder %s81, %s82
      %p94 = scmp.eq.s32.totalorder %s30, 1
      %p95 = por %p93, %p94
      %p97 = scmp.ne.s32.totalorder %s82, %s96
      %p98 = scmp.eq.s32.totalorder %s30, 0
      %p99 = por %p97, %p98
      %s101 = sadd.s32 %s100, 1
      %p104 = scmp.eq.s32.totalorder %s24, 1
      %p105 = scmp.ne.s32.totalorder %s100, %s102
      %p106 = scmp.eq.s32.totalorder %s24, 0
      %p107 = por %p105, %p106
      %p108 = scmp.ne.s32.totalorder %s100, %s102
      %p109 = scmp.eq.s32.totalorder %s29, 1
      %p110 = por %p108, %p109
      %p111 = scmp.ne.s32.totalorder %s102, %s103
      %p112 = scmp.eq.s32.totalorder %s29, 0
      %p113 = por %p111, %p112
      %p114 = scmp.ne.s32.totalorder %s102, %s103
      %p115 = scmp.eq.s32.totalorder %s30, 1
      %p116 = por %p114, %p115
      %p118 = scmp.ne.s32.totalorder %s103, %s117
      %p119 = scmp.eq.s32.totalorder %s30, 0
      %p120 = por %p118, %p119
      %s122 = sadd.s32 %s121, 1
      %p125 = scmp.eq.s32.totalorder %s24, 1
      %p126 = scmp.ne.s32.totalorder %s121, %s123
      %p127 = scmp.eq.s32.totalorder %s24, 0
      %p128 = por %p126, %p127
      %p129 = scmp.ne.s32.totalorder %s121, %s123
      %p130 = scmp.eq.s32.totalorder %s29, 1
      %p131 = por %p129, %p130
      %p132 = scmp.ne.s32.totalorder %s123, %s124
      %p133 = scmp.eq.s32.totalorder %s29, 0
      %p134 = por %p132, %p133
      %p135 = scmp.ne.s32.totalorder %s123, %s124
      %p136 = scmp.eq.s32.totalorder %s30, 1
      %p137 = por %p135, %p136
      %p139 = scmp.ne.s32.totalorder %s124, %s138
      %p140 = scmp.eq.s32.totalorder %s30, 0
      %p141 = por %p139, %p140
      %s143 = sadd.s32 %s142, 1
      %p146 = scmp.eq.s32.totalorder %s24, 1
      %p147 = scmp.ne.s32.totalorder %s142, %s144
      %p148 = scmp.eq.s32.totalorder %s24, 0
      %p149 = por %p147, %p148
      %p150 = scmp.ne.s32.totalorder %s142, %s144
      %p151 = scmp.eq.s32.totalorder %s29, 1
      %p152 = por %p150, %p151
      %p153 = scmp.ne.s32.totalorder %s144, %s145
      %p154 = scmp.eq.s32.totalorder %s29, 0
      %p155 = por %p153, %p154
      %p156 = scmp.ne.s32.totalorder %s144, %s145
      %p157 = scmp.eq.s32.totalorder %s30, 1
      %p158 = por %p156, %p157
      %p160 = scmp.ne.s32.totalorder %s145, %s159
      %p161 = scmp.eq.s32.totalorder %s30, 0
      %p162 = por %p160, %p161
      %s164 = sadd.s32 %s163, 1
      %p167 = scmp.eq.s32.totalorder %s24, 1
      %p168 = scmp.ne.s32.totalorder %s163, %s165
      %p169 = scmp.eq.s32.totalorder %s24, 0
      %p170 = por %p168, %p169
      %p171 = scmp.ne.s32.totalorder %s163, %s165
      %p172 = scmp.eq.s32.totalorder %s29, 1
      %p173 = por %p171, %p172
      %p174 = scmp.ne.s32.totalorder %s165, %s166
      %p175 = scmp.eq.s32.totalorder %s29, 0
      %p176 = por %p174, %p175
      %p177 = scmp.ne.s32.totalorder %s165, %s166
      %p178 = scmp.eq.s32.totalorder %s30, 1
      %p179 = por %p177, %p178
      %p181 = scmp.ne.s32.totalorder %s166, %s180
      %p182 = scmp.eq.s32.totalorder %s30, 0
      %p183 = por %p181, %p182
      %s185 = sadd.s32 %s184, 1
      %p188 = scmp.eq.s32.totalorder %s24, 1
      %p189 = scmp.ne.s32.totalorder %s184, %s186
      %p190 = scmp.eq.s32.totalorder %s24, 0
      %p191 = por %p189, %p190
      %p192 = scmp.ne.s32.totalorder %s184, %s186
      %p193 = scmp.eq.s32.totalorder %s29, 1
      %p194 = por %p192, %p193
      %p195 = scmp.ne.s32.totalorder %s186, %s187
      %p196 = scmp.eq.s32.totalorder %s29, 0
      %p197 = por %p195, %p196
      %p198 = scmp.ne.s32.totalorder %s186, %s187
      %p199 = scmp.eq.s32.totalorder %s30, 1
      %p200 = por %p198, %p199
      %p202 = scmp.ne.s32.totalorder %s187, %s201
      %p203 = scmp.eq.s32.totalorder %s30, 0
      %p204 = por %p202, %p203
      %s206 = sadd.s32 %s205, 1
      %p209 = scmp.eq.s32.totalorder %s24, 1
      %p210 = scmp.ne.s32.totalorder %s205, %s207
      %p211 = scmp.eq.s32.totalorder %s24, 0
      %p212 = por %p210, %p211
      %p213 = scmp.ne.s32.totalorder %s205, %s207
      %p214 = scmp.eq.s32.totalorder %s29, 1
      %p215 = por %p213, %p214
      %p216 = scmp.ne.s32.totalorder %s207, %s208
      %p217 = scmp.eq.s32.totalorder %s29, 0
      %p218 = por %p216, %p217
      %p219 = scmp.ne.s32.totalorder %s207, %s208
      %p220 = scmp.eq.s32.totalorder %s30, 1
      %p221 = por %p219, %p220
      %p223 = scmp.ne.s32.totalorder %s208, %s222
      %p224 = scmp.eq.s32.totalorder %s30, 0
      %p225 = por %p223, %p224
      %s227 = sadd.s32 %s226, 1
      %p230 = scmp.eq.s32.totalorder %s24, 1
      %p231 = scmp.ne.s32.totalorder %s226, %s228
      %p232 = scmp.eq.s32.totalorder %s24, 0
      %p233 = por %p231, %p232
      %p234 = scmp.ne.s32.totalorder %s226, %s228
      %p235 = scmp.eq.s32.totalorder %s29, 1
      %p236 = por %p234, %p235
      %p237 = scmp.ne.s32.totalorder %s228, %s229
      %p238 = scmp.eq.s32.totalorder %s29, 0
      %p239 = por %p237, %p238
      %p240 = scmp.ne.s32.totalorder %s228, %s229
      %p241 = scmp.eq.s32.totalorder %s30, 1
      %p242 = por %p240, %p241
      %p244 = scmp.ne.s32.totalorder %s229, %s243
      %p245 = scmp.eq.s32.totalorder %s30, 0
      %p246 = por %p244, %p245
      %s248 = sadd.s32 %s247, 1
      %p251 = scmp.eq.s32.totalorder %s24, 1
      %p252 = scmp.ne.s32.totalorder %s247, %s249
      %p253 = scmp.eq.s32.totalorder %s24, 0
      %p254 = por %p252, %p253
      %p255 = scmp.ne.s32.totalorder %s247, %s249
      %p256 = scmp.eq.s32.totalorder %s29, 1
      %p257 = por %p255, %p256
      %p258 = scmp.ne.s32.totalorder %s249, %s250
      %p259 = scmp.eq.s32.totalorder %s29, 0
      %p260 = por %p258, %p259
      %p261 = scmp.ne.s32.totalorder %s249, %s250
      %p262 = scmp.eq.s32.totalorder %s30, 1
      %p263 = por %p261, %p262
      %p265 = scmp.ne.s32.totalorder %s250, %s264
      %p266 = scmp.eq.s32.totalorder %s30, 0
      %p267 = por %p265, %p266
      %s269 = sadd.s32 %s268, 1
      %p272 = scmp.eq.s32.totalorder %s24, 1
      %p273 = scmp.ne.s32.totalorder %s268, %s270
      %p274 = scmp.eq.s32.totalorder %s24, 0
      %p275 = por %p273, %p274
      %p276 = scmp.ne.s32.totalorder %s268, %s270
      %p277 = scmp.eq.s32.totalorder %s29, 1
      %p278 = por %p276, %p277
      %p279 = scmp.ne.s32.totalorder %s270, %s271
      %p280 = scmp.eq.s32.totalorder %s29, 0
      %p281 = por %p279, %p280
      %p282 = scmp.ne.s32.totalorder %s270, %s271
      %p283 = scmp.eq.s32.totalorder %s30, 1
      %p284 = por %p282, %p283
      %p286 = scmp.ne.s32.totalorder %s271, %s285
      %p287 = scmp.eq.s32.totalorder %s30, 0
      %p288 = por %p286, %p287
      %s290 = sadd.s32 %s289, 1
      %p293 = scmp.eq.s32.totalorder %s24, 1
      %p294 = scmp.ne.s32.totalorder %s289, %s291
      %p295 = scmp.eq.s32.totalorder %s24, 0
      %p296 = por %p294, %p295
      %p297 = scmp.ne.s32.totalorder %s289, %s291
      %p298 = scmp.eq.s32.totalorder %s29, 1
      %p299 = por %p297, %p298
      %p300 = scmp.ne.s32.totalorder %s291, %s292
      %p301 = scmp.eq.s32.totalorder %s29, 0
      %p302 = por %p300, %p301
      %p303 = scmp.ne.s32.totalorder %s291, %s292
      %p304 = scmp.eq.s32.totalorder %s30, 1
      %p305 = por %p303, %p304
      %p307 = scmp.ne.s32.totalorder %s292, %s306
      %p308 = scmp.eq.s32.totalorder %s30, 0
      %p309 = por %p307, %p308
      %s311 = sadd.s32 %s310, 1
      %p314 = scmp.eq.s32.totalorder %s24, 1
      %p315 = scmp.ne.s32.totalorder %s310, %s312
      %p316 = scmp.eq.s32.totalorder %s24, 0
      %p317 = por %p315, %p316
      %p318 = scmp.ne.s32.totalorder %s310, %s312
      %p319 = scmp.eq.s32.totalorder %s29, 1
      %p320 = por %p318, %p319
      %p321 = scmp.ne.s32.totalorder %s312, %s313
      %p322 = scmp.eq.s32.totalorder %s29, 0
      %p323 = por %p321, %p322
      %p324 = scmp.ne.s32.totalorder %s312, %s313
      %p325 = scmp.eq.s32.totalorder %s30, 1
      %p326 = por %p324, %p325
      %p328 = scmp.ne.s32.totalorder %s313, %s327
      %p329 = scmp.eq.s32.totalorder %s30, 0
      %p330 = por %p328, %p329
      %s332 = sadd.s32 %s331, 1
      %p335 = scmp.eq.s32.totalorder %s24, 1
      %p336 = scmp.ne.s32.totalorder %s331, %s333
      %p337 = scmp.eq.s32.totalorder %s24, 0
      %p338 = por %p336, %p337
      %p339 = scmp.ne.s32.totalorder %s331, %s333
      %p340 = scmp.eq.s32.totalorder %s29, 1
      %p341 = por %p339, %p340
      %p342 = scmp.ne.s32.totalorder %s333, %s334
      %p343 = scmp.eq.s32.totalorder %s29, 0
      %p344 = por %p342, %p343
      %p345 = scmp.ne.s32.totalorder %s333, %s334
      %p346 = scmp.eq.s32.totalorder %s30, 1
      %p347 = por %p345, %p346
      %p349 = scmp.ne.s32.totalorder %s334, %s348
      %p350 = scmp.eq.s32.totalorder %s30, 0
      %p351 = por %p349, %p350
      %s352 = ssub.s32 %s24, %s31
      %p353 = scmp.eq.s32.totalorder %s352, 0
      %s355 = sadd.s32 %s354, 1
      %s356 = scalar_select %p353, %s354, %s355
      %p359 = pneg %p353
      %p360 = scmp.eq.s32.totalorder %s24, 1
      %p361 = por %p359, %p360
      %p362 = scmp.ne.s32.totalorder %s354, %s357
      %p363 = scmp.eq.s32.totalorder %s24, 0
      %p364 = por %p362, %p363
      %p365 = scmp.ne.s32.totalorder %s354, %s357
      %p366 = scmp.eq.s32.totalorder %s29, 1
      %p367 = por %p365, %p366
      %p368 = scmp.ne.s32.totalorder %s357, %s358
      %p369 = scmp.eq.s32.totalorder %s29, 0
      %p370 = por %p368, %p369
      %p371 = scmp.ne.s32.totalorder %s357, %s358
      %p372 = scmp.eq.s32.totalorder %s30, 1
      %p373 = por %p371, %p372
      %p375 = scmp.ne.s32.totalorder %s358, %s374
      %p376 = scmp.eq.s32.totalorder %s30, 0
      %p377 = por %p375, %p376
      %p378 = scmp.le.s32.totalorder 1, %s24
      %p379 = scmp.lt.s32.totalorder %s24, 3
      %p380 = pnand %p378, %p379
      %p381 = pneg %p380
      // Predicated region
      $region9: #{tpu_custom_call.1} parent=5 // pred_check
        _
      $region10: #{tpu_custom_call.1} parent=5 // pred_check_branch
        %383 = sbr.rel (%p380) target = $region12
      $region11: #{tpu_custom_call.1} parent=5 // pred_region
        %s384 = ssub.s32 %s24, 1
        // Predicated region
        $region13: #{tpu_custom_call.1} parent=11 // pred_check
          %p385 = pneg %p71
        $region14: #{tpu_custom_call.1} parent=11 // pred_check_branch
          %387 = sbr.rel (%p385) target = $region16
        $region15: #{tpu_custom_call.1} parent=11 // pred_region
          _
        $region16: #{tpu_custom_call.1} parent=11 // pred_fallthru
          _
        // Predicated region
        $region17: #{tpu_custom_call.1} parent=11 // pred_check
          %p388 = pneg %p92
        $region18: #{tpu_custom_call.1} parent=11 // pred_check_branch
          %390 = sbr.rel (%p388) target = $region20
        $region19: #{tpu_custom_call.1} parent=11 // pred_region
          _
        $region20: #{tpu_custom_call.1} parent=11 // pred_fallthru
          _
        // Predicated region
        $region21: #{tpu_custom_call.1} parent=11 // pred_check
          %p391 = pneg %p113
        $region22: #{tpu_custom_call.1} parent=11 // pred_check_branch
          %393 = sbr.rel (%p391) target = $region24
        $region23: #{tpu_custom_call.1} parent=11 // pred_region
          _
        $region24: #{tpu_custom_call.1} parent=11 // pred_fallthru
          _
        // Predicated region
        $region25: #{tpu_custom_call.1} parent=11 // pred_check
          %p394 = pneg %p134
        $region26: #{tpu_custom_call.1} parent=11 // pred_check_branch
          %396 = sbr.rel (%p394) target = $region28
        $region27: #{tpu_custom_call.1} parent=11 // pred_region
          _
        $region28: #{tpu_custom_call.1} parent=11 // pred_fallthru
          _
        // Predicated region
        $region29: #{tpu_custom_call.1} parent=11 // pred_check
          %p397 = pneg %p155
        $region30: #{tpu_custom_call.1} parent=11 // pred_check_branch
          %399 = sbr.rel (%p397) target = $region32
        $region31: #{tpu_custom_call.1} parent=11 // pred_region
          _
        $region32: #{tpu_custom_call.1} parent=11 // pred_fallthru
          _
        // Predicated region
        $region33: #{tpu_custom_call.1} parent=11 // pred_check
          %p400 = pneg %p176
        $region34: #{tpu_custom_call.1} parent=11 // pred_check_branch
          %402 = sbr.rel (%p400) target = $region36
        $region35: #{tpu_custom_call.1} parent=11 // pred_region
          _
        $region36: #{tpu_custom_call.1} parent=11 // pred_fallthru
          _
        // Predicated region
        $region37: #{tpu_custom_call.1} parent=11 // pred_check
          %p403 = pneg %p197
        $region38: #{tpu_custom_call.1} parent=11 // pred_check_branch
          %405 = sbr.rel (%p403) target = $region40
        $region39: #{tpu_custom_call.1} parent=11 // pred_region
          _
        $region40: #{tpu_custom_call.1} parent=11 // pred_fallthru
          _
        // Predicated region
        $region41: #{tpu_custom_call.1} parent=11 // pred_check
          %p406 = pneg %p218
        $region42: #{tpu_custom_call.1} parent=11 // pred_check_branch
          %408 = sbr.rel (%p406) target = $region44
        $region43: #{tpu_custom_call.1} parent=11 // pred_region
          _
        $region44: #{tpu_custom_call.1} parent=11 // pred_fallthru
          _
        // Predicated region
        $region45: #{tpu_custom_call.1} parent=11 // pred_check
          %p409 = pneg %p239
        $region46: #{tpu_custom_call.1} parent=11 // pred_check_branch
          %411 = sbr.rel (%p409) target = $region48
        $region47: #{tpu_custom_call.1} parent=11 // pred_region
          _
        $region48: #{tpu_custom_call.1} parent=11 // pred_fallthru
          _
        // Predicated region
        $region49: #{tpu_custom_call.1} parent=11 // pred_check
          %p412 = pneg %p260
        $region50: #{tpu_custom_call.1} parent=11 // pred_check_branch
          %414 = sbr.rel (%p412) target = $region52
        $region51: #{tpu_custom_call.1} parent=11 // pred_region
          _
        $region52: #{tpu_custom_call.1} parent=11 // pred_fallthru
          _
        // Predicated region
        $region53: #{tpu_custom_call.1} parent=11 // pred_check
          %p415 = pneg %p281
        $region54: #{tpu_custom_call.1} parent=11 // pred_check_branch
          %417 = sbr.rel (%p415) target = $region56
        $region55: #{tpu_custom_call.1} parent=11 // pred_region
          _
        $region56: #{tpu_custom_call.1} parent=11 // pred_fallthru
          _
        // Predicated region
        $region57: #{tpu_custom_call.1} parent=11 // pred_check
          %p418 = pneg %p302
        $region58: #{tpu_custom_call.1} parent=11 // pred_check_branch
          %420 = sbr.rel (%p418) target = $region60
        $region59: #{tpu_custom_call.1} parent=11 // pred_region
          _
        $region60: #{tpu_custom_call.1} parent=11 // pred_fallthru
          _
        // Predicated region
        $region61: #{tpu_custom_call.1} parent=11 // pred_check
          %p421 = pneg %p323
        $region62: #{tpu_custom_call.1} parent=11 // pred_check_branch
          %423 = sbr.rel (%p421) target = $region64
        $region63: #{tpu_custom_call.1} parent=11 // pred_region
          _
        $region64: #{tpu_custom_call.1} parent=11 // pred_fallthru
          _
        // Predicated region
        $region65: #{tpu_custom_call.1} parent=11 // pred_check
          %p424 = pneg %p344
        $region66: #{tpu_custom_call.1} parent=11 // pred_check_branch
          %426 = sbr.rel (%p424) target = $region68
        $region67: #{tpu_custom_call.1} parent=11 // pred_region
          _
        $region68: #{tpu_custom_call.1} parent=11 // pred_fallthru
          _
      $region12: #{tpu_custom_call.1} parent=5 // pred_fallthru
        _
      %p427 = scmp.lt.s32.totalorder %s24, 2
      // Predicated region
      $region69: #{tpu_custom_call.1} parent=5 // pred_check
        %p428 = pneg %p427
      $region70: #{tpu_custom_call.1} parent=5 // pred_check_branch
        %430 = sbr.rel (%p428) target = $region72
      $region71: #{tpu_custom_call.1} parent=5 // pred_region
        // Predicated region
        $region73: #{tpu_custom_call.1} parent=71 // pred_check
          %p431 = pneg %p44
        $region74: #{tpu_custom_call.1} parent=71 // pred_check_branch
          %433 = sbr.rel (%p431) target = $region76
        $region75: #{tpu_custom_call.1} parent=71 // pred_region
          %p434 = scmp.lt.s32.totalorder %s24, 1
          %s435 = scalar_select %p434, %s24, 1
          %s436 = smul.addr %s435, 8
          %s437 = scalar_lea.vmem %s0, %s436
        $region76: #{tpu_custom_call.1} parent=71 // pred_fallthru
          _
      $region72: #{tpu_custom_call.1} parent=5 // pred_fallthru
        _
      %p438 = scmp.le.s32.totalorder 1, %s24
      %p439 = scmp.lt.s32.totalorder %s24, 3
      %p440 = pnand %p438, %p439
      %p441 = pneg %p440
      // Predicated region
      $region77: #{tpu_custom_call.1} parent=5 // pred_check
        _
      $region78: #{tpu_custom_call.1} parent=5 // pred_check_branch
        %443 = sbr.rel (%p440) target = $region80
      $region79: #{tpu_custom_call.1} parent=5 // pred_region
        %s444 = ssub.s32 %s24, 1
        %p445 = scmp.lt.s32.totalorder %s29, 1
        %s446 = scalar_select %p445, %s29, 1
        %s447 = smul.addr %s446, 8
        %s448 = scalar_lea.vmem %s0, %s447
        %p449 = pneg %p50
        %p450 = pneg %p47
        %p451 = pneg %p71
        %p452 = pneg %p68
        %p453 = pneg %p92
        %p454 = pneg %p89
        %p455 = pneg %p113
        %p456 = pneg %p110
        %p457 = pneg %p134
        %p458 = pneg %p131
        %p459 = pneg %p155
        %p460 = pneg %p152
        %p461 = pneg %p176
        %p462 = pneg %p173
        %p463 = pneg %p197
        %p464 = pneg %p194
        %p465 = pneg %p218
        %p466 = pneg %p215
        %p467 = pneg %p239
        %p468 = pneg %p236
        %p469 = pneg %p260
        %p470 = pneg %p257
        %p471 = pneg %p281
        %p472 = pneg %p278
        %p473 = pneg %p302
        %p474 = pneg %p299
        %p475 = pneg %p323
        %p476 = pneg %p320
        %p477 = pneg %p344
        %p478 = pneg %p341
        %p479 = pneg %p370
        %p480 = pneg %p367
        %s481 = sand.u32 %s357, 1
        %s482 = scalar_lea.sflag [#allocation5], %s481
        %s483 = sand.u32 %s357, 1
        %s484 = smul.addr %s483, 8
        %s485 = scalar_lea.vmem [#allocation4], %s484
        %p486 = scmp.lt.s32.totalorder %s29, 1
        %s487 = scalar_select %p486, %s29, 1
        %s488 = smul.addr %s487, 8
        %s489 = scalar_lea.vmem %s0, %s488
        %v491 = vld [vmem:[%s489] sm:$0xff]
        %v492 = vpack.c.bf16 %v491, %v491
        %vm493 = vcmask 257024
        %494 = vst.msk [vmem:[#allocation2] sm:$0xf] %vm493, 0.0
        %vm495 = vcmask 261120
        %496 = vst.msk [vmem:[#allocation2 + $0x4] sm:$0xff] %vm495, %v491
        %497 = vst.msk [vmem:[#allocation2 + $0xc] sm:$0xf] %vm493, 0.0
        %v498 = vld [vmem:[%s4] sm:$0xff]
        %v499 = vld [vmem:[%s5] sm:$0xff]
        %v500 = vld [vmem:[%s13] sm:$0xff]
        %v501 = vld [vmem:[%s13 + $0x8] sm:$0xff]
        %v502 = vld [vmem:[%s13 + $0x10] sm:$0xff]
        %v503 = vld [vmem:[%s13 + $0x18] sm:$0xff]
        %v504 = vld [vmem:[%s14] sm:$0xff]
        %v505 = vld [vmem:[#allocation2 + $0x3] sm:$0xff]
        %v506 = vld [vmem:[#allocation2 + $0x5] sm:$0xff]
        %508 = vrot.lane.b32.xlu0 %v491, 32
        %v509 = vpop.permute.xlu0 %508
        %512 = vrot.lane.b32.xlu0 %v506, 64
        %v513 = vpop.permute.xlu0 %512
        %v515 = vsel %vm495, %v505, %v509
        %vm516 = vcmask 523264
        %v517 = vsel %vm516, %v515, %v513
        %v518 = vpack.c.bf16 %v517, %v517
        %v519 = vld [vmem:[%s1] sm:$0xf]
        %v520 = vld [vmem:[%s1 + $0x4] sm:$0xf]
        %v521 = vld [vmem:[%s1 + $0x8] sm:$0xf]
        %v522 = vld [vmem:[%s1 + $0xc] sm:$0xf]
        %v523 = vld [vmem:[%s1 + $0x10] sm:$0xf]
        %v524 = vld [vmem:[%s1 + $0x14] sm:$0xf]
        %v525 = vld [vmem:[%s1 + $0x18] sm:$0xf]
        %v526 = vld [vmem:[%s1 + $0x1c] sm:$0xf]
        %v527 = vld [vmem:[%s1 + $0x20] sm:$0xf]
        %v528 = vld [vmem:[%s1 + $0x24] sm:$0xf]
        %v529 = vld [vmem:[%s1 + $0x28] sm:$0xf]
        %v530 = vld [vmem:[%s1 + $0x2c] sm:$0xf]
        %v531 = vld [vmem:[%s2] sm:$0x1]
        %v532 = vperm.slane %v531, 0
        %v545 = vunpack.c.l.b16 %v519
        %v546 = vunpack.c.l.b16 %v520
        %v547 = vunpack.c.l.b16 %v521
        %v548 = vunpack.c.l.b16 %v522
        %v549 = vunpack.c.l.b16 %v523
        %v550 = vunpack.c.l.b16 %v524
        %v551 = vunpack.c.l.b16 %v525
        %v552 = vunpack.c.l.b16 %v526
        %v553 = vunpack.c.l.b16 %v527
        %v554 = vunpack.c.l.b16 %v528
        %v555 = vunpack.c.l.b16 %v529
        %v556 = vunpack.c.l.b16 %v530
        %v557 = vpack.c.b16 %v546, %v545
        %v558 = vpack.c.b16 %v548, %v547
        %v559 = vpack.c.b16 %v550, %v549
        %v560 = vpack.c.b16 %v552, %v551
        %v561 = vpack.c.b16 %v554, %v553
        %v562 = vpack.c.b16 %v556, %v555
        %vm569 = vcmask 785408
        %v571 = vsel %vm569, %v518, 0
        %573 = vmatpush.bf16.msra.mxu0 0
        %574 = vmatpush.bf16.msra.mxu0 0
        %575 = vmatpush.bf16.msra.mxu0 %v562
        %576 = vmatpush.bf16.msra.mxu0 %v561
        %577 = vmatpush.bf16.msra.mxu0 %v560
        %578 = vmatpush.bf16.msra.mxu0 %v559
        %579 = vmatpush.bf16.msra.mxu0 %v558
        %580 = vmatpush.bf16.msra.mxu0 %v557
        %581 = vmatmul.bf16.gmra.mxu0 %v571
        %v582 = vpop.f32.mrf.mxu0
        %v583 = vadd.f32 %v532, %v582
        %v584 = vpop.f32.mrf.mxu0
        %585 = vdwg.mxu0
        %v586 = vld [vmem:[%s3] sm:$0x1]
        %v587 = vld [vmem:[%s3 + $0x1] sm:$0x1]
        %vm588 = vcmask 64512
        %v589 = vsel %vm588, %v583, 0.0
        %v590 = vrot.slane %v589, 4
        %v591 = vadd.f32 %v589, %v590
        %v592 = vrot.slane %v591, 2
        %v593 = vadd.f32 %v591, %v592
        %v594 = vrot.slane %v593, 1
        %v595 = vadd.f32 %v593, %v594
        %v596 = vmul.f32 %v583, %v583
        %v597 = vsel %vm588, %v596, 0.0
        %v598 = vrot.slane %v597, 4
        %v599 = vadd.f32 %v597, %v598
        %v600 = vrot.slane %v599, 2
        %v601 = vadd.f32 %v599, %v600
        %v602 = vrot.slane %v601, 1
        %v603 = vadd.f32 %v601, %v602
        %vm604 = vcmask 1040384
        %v605 = vsel %vm604, %v595, %v603
        %v607 = vsel %vm588, %v605, 0
        %609 = vmatpush.msra.mxu0 0.0
        %610 = vmatpush.msra.mxu0 0.0
        %611 = vmatpush.msra.mxu0 0.0
        %612 = vmatpush.msra.mxu0 0.0
        %613 = vmatpush.msra.mxu0 0.0
        %614 = vmatpush.msra.mxu0 0.0
        %615 = vmatpush.msra.mxu0 0.0
        %616 = vmatpush.msra.mxu0 0.0
        %617 = vmatpush.msra.mxu0 0.0
        %618 = vmatpush.msra.mxu0 0.0
        %619 = vmatpush.msra.mxu0 0.0
        %620 = vmatpush.msra.mxu0 0.0
        %621 = vmatpush.msra.mxu0 0.0
        %622 = vmatpush.msra.mxu0 0.0
        %623 = vmatpush.msra.mxu0 0.0
        %624 = vmatpush.msra.mxu0 %v498
        %625 = vmatmul.f32.gmra.mxu0 %v607
        %v626 = vpop.f32.mrf.mxu0
        %v627 = vadd.f32 0.0, %v626
        %628 = vdwg.mxu0
        %v629 = vrcp.pop 8.0
        %v630 = vmul.f32 8.0, %v629
        %v631 = vsub.f32 1.0, %v630
        %v632 = vmul.f32 %v629, %v631
        %v633 = vadd.f32 %v629, %v632
        %vm634 = vweird.f32 %v629
        %v635 = vsel %vm634, %v629, %v633
        %v636 = vmul.f32 %v627, %v635
        %v637 = vmul.f32 %v636, %v636
        %v639 = vrot.slane %v637, 7
        %v641 = vsub.f32 %v636, %v639
        %v642 = vmax.f32 %v641, 0.0
        %v643 = vsel %vm604, %v636, %v642
        %v645 = vsel %vm588, %v643, 0
        %647 = vmatpush.msra.mxu0 0.0
        %648 = vmatpush.msra.mxu0 0.0
        %649 = vmatpush.msra.mxu0 0.0
        %650 = vmatpush.msra.mxu0 0.0
        %651 = vmatpush.msra.mxu0 0.0
        %652 = vmatpush.msra.mxu0 0.0
        %653 = vmatpush.msra.mxu0 0.0
        %654 = vmatpush.msra.mxu0 0.0
        %655 = vmatpush.msra.mxu0 0.0
        %656 = vmatpush.msra.mxu0 0.0
        %657 = vmatpush.msra.mxu0 0.0
        %658 = vmatpush.msra.mxu0 0.0
        %659 = vmatpush.msra.mxu0 0.0
        %660 = vmatpush.msra.mxu0 0.0
        %661 = vmatpush.msra.mxu0 0.0
        %662 = vmatpush.msra.mxu0 %v499
        %663 = vmatmul.f32.gmra.mxu0 %v645
        %v664 = vpop.f32.mrf.mxu0
        %v665 = vadd.f32 0.0, %v664
        %666 = vdwg.mxu0
        %v667 = vperm.slane %v665, 0
        %v668 = vsub.f32 %v583, %v667
        %v669 = vadd.f32 %v665, 1e-05
        %v670 = vrsqrt.pop %v669
        %v671 = vmul.f32 %v670, %v669
        %v672 = vmul.f32 %v671, %v670
        %v673 = vmul.f32 0.5, %v672
        %v674 = vsub.f32 1.5, %v673
        %v675 = vmul.f32 %v670, %v674
        %vm676 = vweird.f32 %v669
        %vm677 = vweird.f32 %v670
        %vm678 = vmor %vm676, %vm677
        %v679 = vsel %vm678, %v670, %v675
        %v680 = vperm.slane %v679, 1
        %v681 = vmul.f32 %v668, %v680
        %v682 = vperm.slane %v586, 0
        %v683 = vmul.f32 %v681, %v682
        %v684 = vperm.slane %v587, 0
        %v685 = vadd.f32 %v683, %v684
        %v686 = vmax.f32 %v685, 0.0
        %v687 = vld [vmem:[#allocation2 + $0x2] sm:$0xff]
        %v688 = vld [vmem:[#allocation2 + $0x6] sm:$0xff]
        %690 = vrot.lane.b32.xlu0 %v688, 64
        %v691 = vpop.permute.xlu0 %690
        %v693 = vsel %vm495, %v687, %v509
        %v694 = vsel %vm516, %v693, %v691
        %v695 = vpack.c.bf16 %v694, %v694
        %s696 = scalar_lea.vmem %s1, 48
        %v697 = vld [vmem:[%s696] sm:$0xf]
        %v698 = vld [vmem:[%s696 + $0x4] sm:$0xf]
        %v699 = vld [vmem:[%s696 + $0x8] sm:$0xf]
        %v700 = vld [vmem:[%s696 + $0xc] sm:$0xf]
        %v701 = vld [vmem:[%s696 + $0x10] sm:$0xf]
        %v702 = vld [vmem:[%s696 + $0x14] sm:$0xf]
        %v703 = vld [vmem:[%s696 + $0x18] sm:$0xf]
        %v704 = vld [vmem:[%s696 + $0x1c] sm:$0xf]
        %v705 = vld [vmem:[%s696 + $0x20] sm:$0xf]
        %v706 = vld [vmem:[%s696 + $0x24] sm:$0xf]
        %v707 = vld [vmem:[%s696 + $0x28] sm:$0xf]
        %v708 = vld [vmem:[%s696 + $0x2c] sm:$0xf]
        %v709 = vld [vmem:[%s2 + $0x1] sm:$0x1]
        %v710 = vperm.slane %v709, 0
        %v723 = vunpack.c.l.b16 %v697
        %v724 = vunpack.c.l.b16 %v698
        %v725 = vunpack.c.l.b16 %v699
        %v726 = vunpack.c.l.b16 %v700
        %v727 = vunpack.c.l.b16 %v701
        %v728 = vunpack.c.l.b16 %v702
        %v729 = vunpack.c.l.b16 %v703
        %v730 = vunpack.c.l.b16 %v704
        %v731 = vunpack.c.l.b16 %v705
        %v732 = vunpack.c.l.b16 %v706
        %v733 = vunpack.c.l.b16 %v707
        %v734 = vunpack.c.l.b16 %v708
        %v735 = vpack.c.b16 %v724, %v723
        %v736 = vpack.c.b16 %v726, %v725
        %v737 = vpack.c.b16 %v728, %v727
        %v738 = vpack.c.b16 %v730, %v729
        %v739 = vpack.c.b16 %v732, %v731
        %v740 = vpack.c.b16 %v734, %v733
        %v748 = vsel %vm569, %v695, 0
        %750 = vmatpush.bf16.msra.mxu0 0
        %751 = vmatpush.bf16.msra.mxu0 0
        %752 = vmatpush.bf16.msra.mxu0 %v740
        %753 = vmatpush.bf16.msra.mxu0 %v739
        %754 = vmatpush.bf16.msra.mxu0 %v738
        %755 = vmatpush.bf16.msra.mxu0 %v737
        %756 = vmatpush.bf16.msra.mxu0 %v736
        %757 = vmatpush.bf16.msra.mxu0 %v735
        %758 = vmatmul.bf16.gmra.mxu0 %v748
        %v759 = vpop.f32.mrf.mxu0
        %v760 = vadd.f32 %v710, %v759
        %v761 = vpop.f32.mrf.mxu0
        %762 = vdwg.mxu0
        %s763 = scalar_lea.vmem %s3, 2
        %v764 = vld [vmem:[%s763] sm:$0x1]
        %v765 = vld [vmem:[%s763 + $0x1] sm:$0x1]
        %v766 = vsel %vm588, %v760, 0.0
        %v767 = vrot.slane %v766, 4
        %v768 = vadd.f32 %v766, %v767
        %v769 = vrot.slane %v768, 2
        %v770 = vadd.f32 %v768, %v769
        %v771 = vrot.slane %v770, 1
        %v772 = vadd.f32 %v770, %v771
        %v773 = vmul.f32 %v760, %v760
        %v774 = vsel %vm588, %v773, 0.0
        %v775 = vrot.slane %v774, 4
        %v776 = vadd.f32 %v774, %v775
        %v777 = vrot.slane %v776, 2
        %v778 = vadd.f32 %v776, %v777
        %v779 = vrot.slane %v778, 1
        %v780 = vadd.f32 %v778, %v779
        %v781 = vsel %vm604, %v772, %v780
        %v783 = vsel %vm588, %v781, 0
        %785 = vmatpush.msra.mxu0 0.0
        %786 = vmatpush.msra.mxu0 0.0
        %787 = vmatpush.msra.mxu0 0.0
        %788 = vmatpush.msra.mxu0 0.0
        %789 = vmatpush.msra.mxu0 0.0
        %790 = vmatpush.msra.mxu0 0.0
        %791 = vmatpush.msra.mxu0 0.0
        %792 = vmatpush.msra.mxu0 0.0
        %793 = vmatpush.msra.mxu0 0.0
        %794 = vmatpush.msra.mxu0 0.0
        %795 = vmatpush.msra.mxu0 0.0
        %796 = vmatpush.msra.mxu0 0.0
        %797 = vmatpush.msra.mxu0 0.0
        %798 = vmatpush.msra.mxu0 0.0
        %799 = vmatpush.msra.mxu0 0.0
        %800 = vmatpush.msra.mxu0 %v498
        %801 = vmatmul.f32.gmra.mxu0 %v783
        %v802 = vpop.f32.mrf.mxu0
        %v803 = vadd.f32 0.0, %v802
        %804 = vdwg.mxu0
        %v805 = vmul.f32 %v803, %v635
        %v806 = vmul.f32 %v805, %v805
        %v808 = vrot.slane %v806, 7
        %v810 = vsub.f32 %v805, %v808
        %v811 = vmax.f32 %v810, 0.0
        %v812 = vsel %vm604, %v805, %v811
        %v814 = vsel %vm588, %v812, 0
        %816 = vmatpush.msra.mxu0 0.0
        %817 = vmatpush.msra.mxu0 0.0
        %818 = vmatpush.msra.mxu0 0.0
        %819 = vmatpush.msra.mxu0 0.0
        %820 = vmatpush.msra.mxu0 0.0
        %821 = vmatpush.msra.mxu0 0.0
        %822 = vmatpush.msra.mxu0 0.0
        %823 = vmatpush.msra.mxu0 0.0
        %824 = vmatpush.msra.mxu0 0.0
        %825 = vmatpush.msra.mxu0 0.0
        %826 = vmatpush.msra.mxu0 0.0
        %827 = vmatpush.msra.mxu0 0.0
        %828 = vmatpush.msra.mxu0 0.0
        %829 = vmatpush.msra.mxu0 0.0
        %830 = vmatpush.msra.mxu0 0.0
        %831 = vmatpush.msra.mxu0 %v499
        %832 = vmatmul.f32.gmra.mxu0 %v814
        %v833 = vpop.f32.mrf.mxu0
        %v834 = vadd.f32 0.0, %v833
        %835 = vdwg.mxu0
        %v836 = vperm.slane %v834, 0
        %v837 = vsub.f32 %v760, %v836
        %v838 = vadd.f32 %v834, 1e-05
        %v839 = vrsqrt.pop %v838
        %v840 = vmul.f32 %v839, %v838
        %v841 = vmul.f32 %v840, %v839
        %v842 = vmul.f32 0.5, %v841
        %v843 = vsub.f32 1.5, %v842
        %v844 = vmul.f32 %v839, %v843
        %vm845 = vweird.f32 %v838
        %vm846 = vweird.f32 %v839
        %vm847 = vmor %vm845, %vm846
        %v848 = vsel %vm847, %v839, %v844
        %v849 = vperm.slane %v848, 1
        %v850 = vmul.f32 %v837, %v849
        %v851 = vperm.slane %v764, 0
        %v852 = vmul.f32 %v850, %v851
        %v853 = vperm.slane %v765, 0
        %v854 = vadd.f32 %v852, %v853
        %v855 = vmax.f32 %v854, 0.0
        %v856 = vld [vmem:[#allocation2] sm:$0xff]
        %v857 = vld [vmem:[#allocation2 + $0x8] sm:$0xff]
        %859 = vrot.lane.b32.xlu0 %v857, 64
        %v860 = vpop.permute.xlu0 %859
        %v862 = vsel %vm495, %v856, %v509
        %v863 = vsel %vm516, %v862, %v860
        %v864 = vpack.c.bf16 %v863, %v863
        %s865 = scalar_lea.vmem %s1, 96
        %v866 = vld [vmem:[%s865] sm:$0xf]
        %v867 = vld [vmem:[%s865 + $0x4] sm:$0xf]
        %v868 = vld [vmem:[%s865 + $0x8] sm:$0xf]
        %v869 = vld [vmem:[%s865 + $0xc] sm:$0xf]
        %v870 = vld [vmem:[%s865 + $0x10] sm:$0xf]
        %v871 = vld [vmem:[%s865 + $0x14] sm:$0xf]
        %v872 = vld [vmem:[%s865 + $0x18] sm:$0xf]
        %v873 = vld [vmem:[%s865 + $0x1c] sm:$0xf]
        %v874 = vld [vmem:[%s865 + $0x20] sm:$0xf]
        %v875 = vld [vmem:[%s865 + $0x24] sm:$0xf]
        %v876 = vld [vmem:[%s865 + $0x28] sm:$0xf]
        %v877 = vld [vmem:[%s865 + $0x2c] sm:$0xf]
        %v878 = vld [vmem:[%s2 + $0x2] sm:$0x1]
        %v879 = vperm.slane %v878, 0
        %v892 = vunpack.c.l.b16 %v866
        %v893 = vunpack.c.l.b16 %v867
        %v894 = vunpack.c.l.b16 %v868
        %v895 = vunpack.c.l.b16 %v869
        %v896 = vunpack.c.l.b16 %v870
        %v897 = vunpack.c.l.b16 %v871
        %v898 = vunpack.c.l.b16 %v872
        %v899 = vunpack.c.l.b16 %v873
        %v900 = vunpack.c.l.b16 %v874
        %v901 = vunpack.c.l.b16 %v875
        %v902 = vunpack.c.l.b16 %v876
        %v903 = vunpack.c.l.b16 %v877
        %v904 = vpack.c.b16 %v893, %v892
        %v905 = vpack.c.b16 %v895, %v894
        %v906 = vpack.c.b16 %v897, %v896
        %v907 = vpack.c.b16 %v899, %v898
        %v908 = vpack.c.b16 %v901, %v900
        %v909 = vpack.c.b16 %v903, %v902
        %v917 = vsel %vm569, %v864, 0
        %919 = vmatpush.bf16.msra.mxu0 0
        %920 = vmatpush.bf16.msra.mxu0 0
        %921 = vmatpush.bf16.msra.mxu0 %v909
        %922 = vmatpush.bf16.msra.mxu0 %v908
        %923 = vmatpush.bf16.msra.mxu0 %v907
        %924 = vmatpush.bf16.msra.mxu0 %v906
        %925 = vmatpush.bf16.msra.mxu0 %v905
        %926 = vmatpush.bf16.msra.mxu0 %v904
        %927 = vmatmul.bf16.gmra.mxu0 %v917
        %v928 = vpop.f32.mrf.mxu0
        %v929 = vadd.f32 %v879, %v928
        %v930 = vpop.f32.mrf.mxu0
        %931 = vdwg.mxu0
        %s932 = scalar_lea.vmem %s3, 4
        %v933 = vld [vmem:[%s932] sm:$0x1]
        %v934 = vld [vmem:[%s932 + $0x1] sm:$0x1]
        %v935 = vsel %vm588, %v929, 0.0
        %v936 = vrot.slane %v935, 4
        %v937 = vadd.f32 %v935, %v936
        %v938 = vrot.slane %v937, 2
        %v939 = vadd.f32 %v937, %v938
        %v940 = vrot.slane %v939, 1
        %v941 = vadd.f32 %v939, %v940
        %v942 = vmul.f32 %v929, %v929
        %v943 = vsel %vm588, %v942, 0.0
        %v944 = vrot.slane %v943, 4
        %v945 = vadd.f32 %v943, %v944
        %v946 = vrot.slane %v945, 2
        %v947 = vadd.f32 %v945, %v946
        %v948 = vrot.slane %v947, 1
        %v949 = vadd.f32 %v947, %v948
        %v950 = vsel %vm604, %v941, %v949
        %v952 = vsel %vm588, %v950, 0
        %954 = vmatpush.msra.mxu0 0.0
        %955 = vmatpush.msra.mxu0 0.0
        %956 = vmatpush.msra.mxu0 0.0
        %957 = vmatpush.msra.mxu0 0.0
        %958 = vmatpush.msra.mxu0 0.0
        %959 = vmatpush.msra.mxu0 0.0
        %960 = vmatpush.msra.mxu0 0.0
        %961 = vmatpush.msra.mxu0 0.0
        %962 = vmatpush.msra.mxu0 0.0
        %963 = vmatpush.msra.mxu0 0.0
        %964 = vmatpush.msra.mxu0 0.0
        %965 = vmatpush.msra.mxu0 0.0
        %966 = vmatpush.msra.mxu0 0.0
        %967 = vmatpush.msra.mxu0 0.0
        %968 = vmatpush.msra.mxu0 0.0
        %969 = vmatpush.msra.mxu0 %v498
        %970 = vmatmul.f32.gmra.mxu0 %v952
        %v971 = vpop.f32.mrf.mxu0
        %v972 = vadd.f32 0.0, %v971
        %973 = vdwg.mxu0
        %v974 = vmul.f32 %v972, %v635
        %v975 = vmul.f32 %v974, %v974
        %v977 = vrot.slane %v975, 7
        %v979 = vsub.f32 %v974, %v977
        %v980 = vmax.f32 %v979, 0.0
        %v981 = vsel %vm604, %v974, %v980
        %v983 = vsel %vm588, %v981, 0
        %985 = vmatpush.msra.mxu0 0.0
        %986 = vmatpush.msra.mxu0 0.0
        %987 = vmatpush.msra.mxu0 0.0
        %988 = vmatpush.msra.mxu0 0.0
        %989 = vmatpush.msra.mxu0 0.0
        %990 = vmatpush.msra.mxu0 0.0
        %991 = vmatpush.msra.mxu0 0.0
        %992 = vmatpush.msra.mxu0 0.0
        %993 = vmatpush.msra.mxu0 0.0
        %994 = vmatpush.msra.mxu0 0.0
        %995 = vmatpush.msra.mxu0 0.0
        %996 = vmatpush.msra.mxu0 0.0
        %997 = vmatpush.msra.mxu0 0.0
        %998 = vmatpush.msra.mxu0 0.0
        %999 = vmatpush.msra.mxu0 0.0
        %1000 = vmatpush.msra.mxu0 %v499
        %1001 = vmatmul.f32.gmra.mxu0 %v983
        %v1002 = vpop.f32.mrf.mxu0
        %v1003 = vadd.f32 0.0, %v1002
        %1004 = vdwg.mxu0
        %v1005 = vperm.slane %v1003, 0
        %v1006 = vsub.f32 %v929, %v1005
        %v1007 = vadd.f32 %v1003, 1e-05
        %v1008 = vrsqrt.pop %v1007
        %v1009 = vmul.f32 %v1008, %v1007
        %v1010 = vmul.f32 %v1009, %v1008
        %v1011 = vmul.f32 0.5, %v1010
        %v1012 = vsub.f32 1.5, %v1011
        %v1013 = vmul.f32 %v1008, %v1012
        %vm1014 = vweird.f32 %v1007
        %vm1015 = vweird.f32 %v1008
        %vm1016 = vmor %vm1014, %vm1015
        %v1017 = vsel %vm1016, %v1008, %v1013
        %v1018 = vperm.slane %v1017, 1
        %v1019 = vmul.f32 %v1006, %v1018
        %v1020 = vperm.slane %v933, 0
        %v1021 = vmul.f32 %v1019, %v1020
        %v1022 = vperm.slane %v934, 0
        %v1023 = vadd.f32 %v1021, %v1022
        %v1024 = vmax.f32 %v1023, 0.0
        %v1025 = vld [vmem:[%s6] sm:$0xf]
        %v1026 = vld [vmem:[%s6 + $0x4] sm:$0xf]
        %v1027 = vld [vmem:[%s6 + $0x8] sm:$0xf]
        %v1028 = vld [vmem:[%s6 + $0xc] sm:$0xf]
        %v1033 = vunpack.c.l.b16 %v1025
        %v1034 = vunpack.c.l.b16 %v1026
        %v1035 = vunpack.c.l.b16 %v1027
        %v1036 = vunpack.c.l.b16 %v1028
        %v1037 = vpack.c.b16 %v1034, %v1033
        %v1038 = vpack.c.b16 %v1036, %v1035
        %v1042 = vsel %vm495, %v492, 0
        %1044 = vmatpush.bf16.msra.mxu0 0
        %1045 = vmatpush.bf16.msra.mxu0 0
        %1046 = vmatpush.bf16.msra.mxu0 0
        %1047 = vmatpush.bf16.msra.mxu0 0
        %1048 = vmatpush.bf16.msra.mxu0 0
        %1049 = vmatpush.bf16.msra.mxu0 0
        %1050 = vmatpush.bf16.msra.mxu0 %v1038
        %1051 = vmatpush.bf16.msra.mxu0 %v1037
        %1052 = vmatmul.bf16.gmra.mxu0 %v1042
        %v1053 = vpop.f32.mrf.mxu0
        %v1054 = vadd.f32 0.0, %v1053
        %v1055 = vpop.f32.mrf.mxu0
        %1056 = vdwg.mxu0
        %v1057 = vmax.f32 %v1054, 0.0
        %v1058 = vpack.c.bf16 %v1057, %v1057
        %v1059 = vld [vmem:[%s7] sm:$0xf]
        %v1060 = vld [vmem:[%s8] sm:$0x1]
        %v1061 = vperm.slane %v1060, 0
        %v1063 = vsel %vm588, %v1058, 0
        %vm1065 = vcmask 1043456
        %v1067 = vsel %vm1065, %v1059, 0
        %1069 = vmatpush.bf16.msra.mxu0 0
        %1070 = vmatpush.bf16.msra.mxu0 0
        %1071 = vmatpush.bf16.msra.mxu0 0
        %1072 = vmatpush.bf16.msra.mxu0 0
        %1073 = vmatpush.bf16.msra.mxu0 0
        %1074 = vmatpush.bf16.msra.mxu0 0
        %1075 = vmatpush.bf16.msra.mxu0 0
        %1076 = vmatpush.bf16.msra.mxu0 %v1067
        %1077 = vmatmul.bf16.gmra.mxu0 %v1063
        %v1078 = vpop.f32.mrf.mxu0
        %v1079 = vadd.f32 %v1061, %v1078
        %v1080 = vpop.f32.mrf.mxu0
        %1081 = vdwg.mxu0
        %s1082 = scalar_lea.vmem %s7, 4
        %v1083 = vld [vmem:[%s1082] sm:$0xf]
        %v1084 = vld [vmem:[%s8 + $0x1] sm:$0x1]
        %v1085 = vperm.slane %v1084, 0
        %v1087 = vsel %vm1065, %v1083, 0
        %1089 = vmatpush.bf16.msra.mxu0 0
        %1090 = vmatpush.bf16.msra.mxu0 0
        %1091 = vmatpush.bf16.msra.mxu0 0
        %1092 = vmatpush.bf16.msra.mxu0 0
        %1093 = vmatpush.bf16.msra.mxu0 0
        %1094 = vmatpush.bf16.msra.mxu0 0
        %1095 = vmatpush.bf16.msra.mxu0 0
        %1096 = vmatpush.bf16.msra.mxu0 %v1087
        %1097 = vmatmul.bf16.gmra.mxu0 %v1063
        %v1098 = vpop.f32.mrf.mxu0
        %v1099 = vadd.f32 %v1085, %v1098
        %v1100 = vpop.f32.mrf.mxu0
        %1101 = vdwg.mxu0
        %s1102 = scalar_lea.vmem %s7, 8
        %v1103 = vld [vmem:[%s1102] sm:$0xf]
        %v1104 = vld [vmem:[%s8 + $0x2] sm:$0x1]
        %v1105 = vperm.slane %v1104, 0
        %v1107 = vsel %vm1065, %v1103, 0
        %1109 = vmatpush.bf16.msra.mxu0 0
        %1110 = vmatpush.bf16.msra.mxu0 0
        %1111 = vmatpush.bf16.msra.mxu0 0
        %1112 = vmatpush.bf16.msra.mxu0 0
        %1113 = vmatpush.bf16.msra.mxu0 0
        %1114 = vmatpush.bf16.msra.mxu0 0
        %1115 = vmatpush.bf16.msra.mxu0 0
        %1116 = vmatpush.bf16.msra.mxu0 %v1107
        %1117 = vmatmul.bf16.gmra.mxu0 %v1063
        %v1118 = vpop.f32.mrf.mxu0
        %v1119 = vadd.f32 %v1105, %v1118
        %v1120 = vpop.f32.mrf.mxu0
        %1121 = vdwg.mxu0
        %v1122 = vpack.c.bf16 %v1079, %v1079
        %v1123 = vpack.c.bf16 %v1099, %v1099
        %vm1124 = vcmask 31744
        %v1126 = vsel %vm1124, %v1122, 0
        %v1129 = vsel %vm1124, %v1123, 0
        %1131 = vmatpush.bf16.xpose.msra.mxu0 0
        %1132 = vmatpush.bf16.xpose.msra.mxu0 0
        %1133 = vmatpush.bf16.xpose.msra.mxu0 0
        %1134 = vmatpush.bf16.xpose.msra.mxu0 0
        %1135 = vmatpush.bf16.xpose.msra.mxu0 0
        %1136 = vmatpush.bf16.xpose.msra.mxu0 0
        %1137 = vmatpush.bf16.xpose.msra.mxu0 0
        %1138 = vmatpush.bf16.xpose.msra.mxu0 %v1129
        %1139 = vmatmul.bf16.gmra.mxu0 %v1126
        %v1140 = vpop.f32.mrf.mxu0
        %v1141 = vadd.f32 0.0, %v1140
        %v1142 = vpop.f32.mrf.mxu0
        %1143 = vdwg.mxu0
        %v1144 = vmul.f32 %v1141, 0.125
        %v1145 = vpack.c.bf16 %v1144, %v1144
        %v1146 = vpack.c.bf16 %v1119, %v1119
        %v1148 = vsel %vm588, %v1145, 0
        %v1151 = vsel %vm1065, %v1146, 0
        %1153 = vmatpush.bf16.msra.mxu0 0
        %1154 = vmatpush.bf16.msra.mxu0 0
        %1155 = vmatpush.bf16.msra.mxu0 0
        %1156 = vmatpush.bf16.msra.mxu0 0
        %1157 = vmatpush.bf16.msra.mxu0 0
        %1158 = vmatpush.bf16.msra.mxu0 0
        %1159 = vmatpush.bf16.msra.mxu0 0
        %1160 = vmatpush.bf16.msra.mxu0 %v1151
        %1161 = vmatmul.bf16.gmra.mxu0 %v1148
        %v1162 = vpop.f32.mrf.mxu0
        %v1163 = vadd.f32 0.0, %v1162
        %v1164 = vpop.f32.mrf.mxu0
        %1165 = vdwg.mxu0
        %v1166 = vpack.c.bf16 %v1163, %v1163
        %v1167 = vld [vmem:[%s9] sm:$0x3]
        %v1168 = vld [vmem:[%s10] sm:$0x1]
        %v1169 = vperm.slane %v1168, 0
        %v1171 = vsel %vm1124, %v1166, 0
        %vm1173 = vcmask 1041408
        %v1175 = vsel %vm1173, %v1167, 0
        %1177 = vmatpush.bf16.msra.mxu0 0
        %1178 = vmatpush.bf16.msra.mxu0 0
        %1179 = vmatpush.bf16.msra.mxu0 0
        %1180 = vmatpush.bf16.msra.mxu0 0
        %1181 = vmatpush.bf16.msra.mxu0 0
        %1182 = vmatpush.bf16.msra.mxu0 0
        %1183 = vmatpush.bf16.msra.mxu0 0
        %1184 = vmatpush.bf16.msra.mxu0 %v1175
        %1185 = vmatmul.bf16.gmra.mxu0 %v1171
        %v1186 = vpop.f32.mrf.mxu0
        %v1187 = vadd.f32 %v1169, %v1186
        %v1188 = vpop.f32.mrf.mxu0
        %1189 = vdwg.mxu0
        %v1190 = vld [vmem:[%s10 + $0x1] sm:$0x1]
        %v1191 = vld [vmem:[%s10 + $0x2] sm:$0x1]
        %v1192 = vld [vmem:[%s10 + $0x3] sm:$0x1]
        %v1193 = vld [vmem:[%s10 + $0x4] sm:$0x1]
        %v1194 = vperm.slane %v1192, 0
        %v1195 = vsub.f32 %v1187, %v1194
        %v1196 = vadd.f32 %v1193, 1e-05
        %v1197 = vrsqrt.pop %v1196
        %v1198 = vmul.f32 %v1197, %v1196
        %v1199 = vmul.f32 %v1198, %v1197
        %v1200 = vmul.f32 0.5, %v1199
        %v1201 = vsub.f32 1.5, %v1200
        %v1202 = vmul.f32 %v1197, %v1201
        %vm1203 = vweird.f32 %v1196
        %vm1204 = vweird.f32 %v1197
        %vm1205 = vmor %vm1203, %vm1204
        %v1206 = vsel %vm1205, %v1197, %v1202
        %v1207 = vperm.slane %v1206, 0
        %v1208 = vmul.f32 %v1195, %v1207
        %v1209 = vperm.slane %v1190, 0
        %v1210 = vmul.f32 %v1208, %v1209
        %v1211 = vperm.slane %v1191, 0
        %v1212 = vadd.f32 %v1210, %v1211
        %v1213 = vadd.f32 %v1212, %v1057
        %1215 = vrot.lane.b32.xlu0 %v855, 8
        %v1216 = vpop.permute.xlu0 %1215
        %1219 = vrot.lane.b32.xlu0 %v1024, 16
        %v1220 = vpop.permute.xlu0 %1219
        %1223 = vrot.lane.b32.xlu0 %v1213, 24
        %v1224 = vpop.permute.xlu0 %1223
        %v1226 = vsel %vm588, %v686, %v1216
        %vm1227 = vcmask 130048
        %v1228 = vsel %vm1227, %v1226, %v1220
        %vm1229 = vcmask 195584
        %v1230 = vsel %vm1229, %v1228, %v1224
        %vm1231 = vcmask 253952
        %1232 = vst.msk [vmem:[#allocation3] sm:$0x1] %vm1231, 0.0
        %1233 = vst.msk [vmem:[#allocation3 + $0x1] sm:$0xff] %vm495, %v1230
        %1234 = vst.msk [vmem:[#allocation3 + $0x9] sm:$0x1] %vm1231, 0.0
        %v1235 = vld [vmem:[#allocation3] sm:$0xff]
        %v1236 = vld [vmem:[#allocation3 + $0x2] sm:$0xff]
        %1238 = vrot.lane.b32.xlu0 %v1230, 32
        %v1239 = vpop.permute.xlu0 %1238
        %1242 = vrot.lane.b32.xlu0 %v1236, 64
        %v1243 = vpop.permute.xlu0 %1242
        %v1245 = vsel %vm495, %v1235, %v1239
        %v1246 = vsel %vm516, %v1245, %v1243
        %v1247 = vpack.c.bf16 %v1246, %v1246
        %v1248 = vld [vmem:[%s11] sm:$0xf]
        %v1249 = vld [vmem:[%s11 + $0x4] sm:$0xf]
        %v1250 = vld [vmem:[%s11 + $0x8] sm:$0xf]
        %v1251 = vld [vmem:[%s11 + $0xc] sm:$0xf]
        %v1252 = vld [vmem:[%s11 + $0x10] sm:$0xf]
        %v1253 = vld [vmem:[%s11 + $0x14] sm:$0xf]
        %v1254 = vld [vmem:[%s11 + $0x18] sm:$0xf]
        %v1255 = vld [vmem:[%s11 + $0x1c] sm:$0xf]
        %v1256 = vld [vmem:[%s11 + $0x20] sm:$0xf]
        %v1257 = vld [vmem:[%s11 + $0x24] sm:$0xf]
        %v1258 = vld [vmem:[%s11 + $0x28] sm:$0xf]
        %v1259 = vld [vmem:[%s11 + $0x2c] sm:$0xf]
        %v1272 = vunpack.c.l.b16 %v1248
        %v1273 = vunpack.c.l.b16 %v1249
        %v1274 = vunpack.c.l.b16 %v1250
        %v1275 = vunpack.c.l.b16 %v1251
        %v1276 = vunpack.c.l.b16 %v1252
        %v1277 = vunpack.c.l.b16 %v1253
        %v1278 = vunpack.c.l.b16 %v1254
        %v1279 = vunpack.c.l.b16 %v1255
        %v1280 = vunpack.c.l.b16 %v1256
        %v1281 = vunpack.c.l.b16 %v1257
        %v1282 = vunpack.c.l.b16 %v1258
        %v1283 = vunpack.c.l.b16 %v1259
        %v1284 = vpack.c.b16 %v1273, %v1272
        %v1285 = vpack.c.b16 %v1275, %v1274
        %v1286 = vpack.c.b16 %v1277, %v1276
        %v1287 = vpack.c.b16 %v1279, %v1278
        %v1288 = vpack.c.b16 %v1281, %v1280
        %v1289 = vpack.c.b16 %v1283, %v1282
        %v1297 = vsel %vm569, %v1247, 0
        %1299 = vmatpush.bf16.msra.mxu0 0
        %1300 = vmatpush.bf16.msra.mxu0 0
        %1301 = vmatpush.bf16.msra.mxu0 %v1289
        %1302 = vmatpush.bf16.msra.mxu0 %v1288
        %1303 = vmatpush.bf16.msra.mxu0 %v1287
        %1304 = vmatpush.bf16.msra.mxu0 %v1286
        %1305 = vmatpush.bf16.msra.mxu0 %v1285
        %1306 = vmatpush.bf16.msra.mxu0 %v1284
        %1307 = vmatmul.bf16.gmra.mxu0 %v1297
        %v1308 = vpop.f32.mrf.mxu0
        %v1309 = vadd.f32 0.0, %v1308
        %v1310 = vpop.f32.mrf.mxu0
        %1311 = vdwg.mxu0
        %v1312 = vld [vmem:[%s12] sm:$0x1]
        %v1313 = vld [vmem:[%s12 + $0x1] sm:$0x1]
        %v1314 = vsel %vm495, %v1309, 0.0
        %v1315 = vrot.slane %v1314, 4
        %v1316 = vadd.f32 %v1314, %v1315
        %v1317 = vrot.slane %v1316, 2
        %v1318 = vadd.f32 %v1316, %v1317
        %v1319 = vrot.slane %v1318, 1
        %v1320 = vadd.f32 %v1318, %v1319
        %v1321 = vmul.f32 %v1309, %v1309
        %v1322 = vsel %vm495, %v1321, 0.0
        %v1323 = vrot.slane %v1322, 4
        %v1324 = vadd.f32 %v1322, %v1323
        %v1325 = vrot.slane %v1324, 2
        %v1326 = vadd.f32 %v1324, %v1325
        %v1327 = vrot.slane %v1326, 1
        %v1328 = vadd.f32 %v1326, %v1327
        %v1329 = vsel %vm604, %v1320, %v1328
        %v1331 = vsel %vm495, %v1329, 0
        %1333 = vmatpush.msra.mxu0 0.0
        %1334 = vmatpush.msra.mxu0 0.0
        %1335 = vmatpush.msra.mxu0 0.0
        %1336 = vmatpush.msra.mxu0 0.0
        %1337 = vmatpush.msra.mxu0 0.0
        %1338 = vmatpush.msra.mxu0 0.0
        %1339 = vmatpush.msra.mxu0 0.0
        %1340 = vmatpush.msra.mxu0 0.0
        %1341 = vmatpush.msra.mxu0 0.0
        %1342 = vmatpush.msra.mxu0 0.0
        %1343 = vmatpush.msra.mxu0 0.0
        %1344 = vmatpush.msra.mxu0 0.0
        %1345 = vmatpush.msra.mxu0 %v503
        %1346 = vmatpush.msra.mxu0 %v502
        %1347 = vmatpush.msra.mxu0 %v501
        %1348 = vmatpush.msra.mxu0 %v500
        %1349 = vmatmul.f32.gmra.mxu0 %v1331
        %v1350 = vpop.f32.mrf.mxu0
        %v1351 = vadd.f32 0.0, %v1350
        %1352 = vdwg.mxu0
        %v1353 = vrcp.pop 32.0
        %v1354 = vmul.f32 32.0, %v1353
        %v1355 = vsub.f32 1.0, %v1354
        %v1356 = vmul.f32 %v1353, %v1355
        %v1357 = vadd.f32 %v1353, %v1356
        %vm1358 = vweird.f32 %v1353
        %v1359 = vsel %vm1358, %v1353, %v1357
        %v1360 = vmul.f32 %v1351, %v1359
        %v1361 = vmul.f32 %v1360, %v1360
        %v1363 = vrot.slane %v1361, 7
        %v1365 = vsub.f32 %v1360, %v1363
        %v1366 = vmax.f32 %v1365, 0.0
        %v1367 = vsel %vm604, %v1360, %v1366
        %v1369 = vsel %vm588, %v1367, 0
        %1371 = vmatpush.msra.mxu0 0.0
        %1372 = vmatpush.msra.mxu0 0.0
        %1373 = vmatpush.msra.mxu0 0.0
        %1374 = vmatpush.msra.mxu0 0.0
        %1375 = vmatpush.msra.mxu0 0.0
        %1376 = vmatpush.msra.mxu0 0.0
        %1377 = vmatpush.msra.mxu0 0.0
        %1378 = vmatpush.msra.mxu0 0.0
        %1379 = vmatpush.msra.mxu0 0.0
        %1380 = vmatpush.msra.mxu0 0.0
        %1381 = vmatpush.msra.mxu0 0.0
        %1382 = vmatpush.msra.mxu0 0.0
        %1383 = vmatpush.msra.mxu0 0.0
        %1384 = vmatpush.msra.mxu0 0.0
        %1385 = vmatpush.msra.mxu0 0.0
        %1386 = vmatpush.msra.mxu0 %v504
        %1387 = vmatmul.f32.gmra.mxu0 %v1369
        %v1388 = vpop.f32.mrf.mxu0
        %v1389 = vadd.f32 0.0, %v1388
        %1390 = vdwg.mxu0
        %v1391 = vperm.slane %v1389, 0
        %v1392 = vsub.f32 %v1309, %v1391
        %v1393 = vadd.f32 %v1389, 1e-05
        %v1394 = vrsqrt.pop %v1393
        %v1395 = vmul.f32 %v1394, %v1393
        %v1396 = vmul.f32 %v1395, %v1394
        %v1397 = vmul.f32 0.5, %v1396
        %v1398 = vsub.f32 1.5, %v1397
        %v1399 = vmul.f32 %v1394, %v1398
        %vm1400 = vweird.f32 %v1393
        %vm1401 = vweird.f32 %v1394
        %vm1402 = vmor %vm1400, %vm1401
        %v1403 = vsel %vm1402, %v1394, %v1399
        %v1404 = vperm.slane %v1403, 1
        %v1405 = vmul.f32 %v1392, %v1404
        %v1406 = vperm.slane %v1312, 0
        %v1407 = vmul.f32 %v1405, %v1406
        %v1408 = vperm.slane %v1313, 0
        %v1409 = vadd.f32 %v1407, %v1408
        %v1410 = vmax.f32 %v1409, 0.0
        %v1411 = vadd.f32 %v1410, %v491
        %1412 = vst.msk [vmem:[%s485] sm:$0xff] %vm495, %v1411
        %s1413 = sand.u32 %s357, 1
        %s1414 = scalar_lea.sflag [#allocation5], %s1413
        %s1415 = sand.u32 %s357, 1
        %s1416 = smul.addr %s1415, 8
        %s1417 = scalar_lea.vmem [#allocation4], %s1416
        // Predicated region
        $region81: #{tpu_custom_call.1} parent=79 // pred_check
          %p1418 = pneg %p367
        $region82: #{tpu_custom_call.1} parent=79 // pred_check_branch
          %1420 = sbr.rel (%p1418) target = $region84
        $region83: #{tpu_custom_call.1} parent=79 // pred_region
          %1422 = vsyncadd %s1414, 0
          %s1423 = smul.addr %s29, 8
          %s1424 = scalar_lea.hbm %s15, %s1423
          %s1426 = sshll.u32 %s1417, 4
          %s1427 = int_to_ptr.vmem [resolvable:$true] %s1426
          %s1428 = sshll.u32 %s1424, 4
          %s1429 = int_to_ptr.hbm [resolvable:$true] %s1428
          %1431 = dma.vmem_to_hbm [thread:$0]  %s1427, 128, %s1429, %s1414
        $region84: #{tpu_custom_call.1} parent=79 // pred_fallthru
          _
      $region80: #{tpu_custom_call.1} parent=5 // pred_fallthru
        _
      %p1432 = scmp.le.s32.totalorder 2, %s24
      // Predicated region
      $region85: #{tpu_custom_call.1} parent=5 // pred_check
        %p1433 = pneg %p1432
      $region86: #{tpu_custom_call.1} parent=5 // pred_check_branch
        %1435 = sbr.rel (%p1433) target = $region88
      $region87: #{tpu_custom_call.1} parent=5 // pred_region
        %s1436 = ssub.s32 %s24, 2
        // Predicated region
        $region89: #{tpu_custom_call.1} parent=87 // pred_check
          %p1437 = pneg %p373
        $region90: #{tpu_custom_call.1} parent=87 // pred_check_branch
          %1439 = sbr.rel (%p1437) target = $region92
        $region91: #{tpu_custom_call.1} parent=87 // pred_region
          %s1440 = sand.u32 %s358, 1
          %s1441 = scalar_lea.sflag [#allocation5], %s1440
          %s1442 = sand.u32 %s358, 1
          %s1443 = smul.addr %s1442, 8
          %s1444 = scalar_lea.vmem [#allocation4], %s1443
          %1446 = dma.done %s1441, 128
        $region92: #{tpu_custom_call.1} parent=87 // pred_fallthru
          _
      $region88: #{tpu_custom_call.1} parent=5 // pred_fallthru
        _
    $region6: #{tpu_custom_call.1} parent=1 // loop_footer
      %s28 = sadd.s32 1, %s24
    $region7: #{tpu_custom_call.1} parent=1 // loop_footer_branch
      %23 = sbr.rel target = $region3
    $region8: #{tpu_custom_call.1} parent=1 // loop_exit
      _
    %1447 = vsyncpa [#allocation5], 1
    %s1448 = scalar_lea.sflag [#allocation5], 1
    %1449 = vsyncpa %s1448, 1

</llo_original>
